<compile_context>
chip_gen: v7x
topology: tpu7x:2x2x1
jax: 0.10.0
libtpu: 0.0.40
codegen_flags: <defaults>
</compile_context>

<pallas_src>
import functools

import numpy as np

import jax
import jax.numpy as jnp
from jax.experimental import pallas as pl
from jax.experimental.pallas import tpu as pltpu

_BN_EPS = 1e-5


def _dncnn_block_kernel(*refs, H, W, channels, relus):
    """Entire DnCNN residual block for one image, fully fused, lane-dense.

    channels: (c0, c1, ..., cL) per-conv-layer channel counts (c0 == cL).
    relus:    per-conv-layer bool (True for hidden layers, False for the last).

    Ref order:
      x_ref                      (1, H, W*c0)                lane-dense input
      w_0, b_0, ..., w_{L-1}, b_{L-1}
          w_i : (3, (W+2)*channels[i], W*channels[i+1])  bf16 block-Toeplitz
          b_i : (1, W*channels[i+1])                     f32 width-tiled beta
      out_ref                    (1, H, W*c0)
      pad_a, pad_b               (H+2, (W+2)*cmax) bf16     padded ping-pong
    """
    n_layers = len(relus)
    x_ref = refs[0]
    w_refs = [refs[1 + 2 * i] for i in range(n_layers)]
    b_refs = [refs[2 + 2 * i] for i in range(n_layers)]
    out_ref = refs[1 + 2 * n_layers]
    pads = (refs[2 + 2 * n_layers], refs[3 + 2 * n_layers])

    c0 = channels[0]
    wp = W + 2
    full = pads[0].shape[1]          # (W+2)*cmax fused lanes

    # Halo rows 0 and H+1 are never written by interior stores; zero them once
    # per grid step (O(perimeter), not an O(area) full-buffer clear).  Done
    # every step (not program_id-gated) so "parallel" core sharding is safe.
    for p in pads:
        p[0:1, :] = jnp.zeros((1, full), p.dtype)
        p[H + 1:H + 2, :] = jnp.zeros((1, full), p.dtype)

    def write_interior(dst, y, c):
        # Zero the 1-px left/right halo lane strips for THIS layer's channel
        # width (their lane positions depend on c), then store the (H, W*c)
        # activation slab in one lane-dense store.
        dst[1:H + 1, 0:c] = jnp.zeros((H, c), dst.dtype)
        dst[1:H + 1, (W + 1) * c:(W + 2) * c] = jnp.zeros((H, c), dst.dtype)
        dst[1:H + 1, c:(W + 1) * c] = y.astype(dst.dtype)

    # Place the lane-dense input tile (H, W*c0) in pads[0]'s interior (bf16).
    write_interior(pads[0], x_ref[0], c0)

    for i in range(n_layers):
        cin, cout = channels[i], channels[i + 1]
        src = pads[i % 2]
        # 3x3 conv == three MXU matmuls (one per kernel row dy).  The dx taps
        # and the W/C lane fusion are folded into the block-Toeplitz weights,
        # so there is no im2col patch, no per-tap slab extraction and no
        # reshape: both the operand and the result stay in the lane-dense
        # (rows=H, lanes=W*C) domain.  f32 accumulation, bf16 MXU inputs.
        acc = jnp.zeros((H, W * cout), jnp.float32)
        for dy in range(3):
            slab = src[dy:dy + H, 0:wp * cin]          # bf16 (H, (W+2)*cin)
            acc = acc + jnp.dot(slab, w_refs[i][dy],
                                preferred_element_type=jnp.float32)
        y = acc + b_refs[i][...]                        # folded-BN beta (f32)
        if relus[i]:
            y = jnp.maximum(y, 0.0)
        if i == n_layers - 1:
            # Fused residual epilogue, entirely in the lane-dense domain.
            out_ref[0] = (x_ref[0].astype(jnp.float32) + y).astype(out_ref.dtype)
        else:
            write_interior(pads[(i + 1) % 2], y, cout)


def dncnn_residual_block(x_nchw, kparams):
    """x_nchw: (N, C, H, W) like the PyTorch module.  Returns x + block(x)."""
    N, C, H, W = x_nchw.shape
    channels, relus = kparams["channels"], kparams["relus"]
    assert channels[0] == C and channels[-1] == C
    cmax = max(channels)
    n_layers = len(relus)

    # NCHW -> NHWC -> lane-dense (N, H, W*C).  Cheap boundary ops outside the
    # kernel; W and C are contiguous in NHWC so the reshape is free.
    x_fused = jnp.transpose(x_nchw, (0, 2, 3, 1)).reshape(N, H, W * C)

    in_specs = [pl.BlockSpec((1, H, W * C), lambda n: (n, 0, 0))]
    args = [x_fused]
    for w, b in zip(kparams["weights"], kparams["biases"]):
        in_specs.append(pl.BlockSpec(w.shape, lambda n: (0, 0, 0)))
        in_specs.append(pl.BlockSpec(b.shape, lambda n: (0, 0)))
        args.extend([w, b])

    kernel = functools.partial(_dncnn_block_kernel, H=H, W=W,
                               channels=channels, relus=relus)

    out_fused = pl.pallas_call(
        kernel,
        out_shape=jax.ShapeDtypeStruct((N, H, W * C), x_nchw.dtype),
        grid_spec=pltpu.PrefetchScalarGridSpec(
            num_scalar_prefetch=0,
            grid=(N,),
            in_specs=in_specs,
            out_specs=pl.BlockSpec((1, H, W * C), lambda n: (n, 0, 0)),
            scratch_shapes=[
                pltpu.VMEM((H + 2, (W + 2) * cmax), jnp.bfloat16),  # pad A
                pltpu.VMEM((H + 2, (W + 2) * cmax), jnp.bfloat16),  # pad B
            ],
        ),
        compiler_params=pltpu.CompilerParams(
            dimension_semantics=("parallel",)),
    )(*args)

    return jnp.transpose(out_fused.reshape(N, H, W, C), (0, 3, 1, 2))


def init_dncnn_params(key, image_channels, filters, depth, use_bnorm):
    """Module-faithful synthetic parameters (OIHW conv weights, BN gamma/beta)."""
    layers = []
    for i in range(depth - 1):
        cin = image_channels if i == 0 else filters
        key, kw, kg, kb = jax.random.split(key, 4)
        w = 0.1 * jax.random.normal(kw, (filters, cin, 3, 3), jnp.float32)  # OIHW
        if use_bnorm:
            gamma = 1.0 + 0.1 * jax.random.normal(kg, (filters,), jnp.float32)
            beta = 0.1 * jax.random.normal(kb, (filters,), jnp.float32)
        else:
            gamma = beta = None
        layers.append(dict(w=w, gamma=gamma, beta=beta, relu=True))
    key, kw = jax.random.split(key)
    w = 0.1 * jax.random.normal(kw, (image_channels, filters, 3, 3), jnp.float32)
    layers.append(dict(w=w, gamma=None, beta=None, relu=False))
    return layers


def prepare_kernel_params(layers, W):
    """Fold eval-mode BN into the conv weights and build the kernel-side
    block-Toeplitz matmul weights (bf16) and width-tiled biases (f32)."""
    channels = [int(layers[0]["w"].shape[1])]
    relus, weights, biases = [], [], []
    for L in layers:
        cout, cin = int(L["w"].shape[0]), int(L["w"].shape[1])
        w = np.asarray(L["w"], np.float32)                      # OIHW
        if L["gamma"] is not None:
            scale = np.asarray(L["gamma"], np.float32) / np.sqrt(1.0 + _BN_EPS)
            w = w * scale[:, None, None, None]                  # fold BN scale
            bias = np.asarray(L["beta"], np.float32)            # BN shift
        else:
            bias = np.zeros((cout,), np.float32)
        w_hwio = np.transpose(w, (2, 3, 1, 0))                  # (3,3,cin,cout)
        # Block-Toeplitz weights: B[dy, (ox+dx)*cin + ci, ox*cout + co]
        # = w[dy, dx, ci, co]; everything else is zero.
        B = np.zeros((3, (W + 2) * cin, W * cout), np.float32)
        for dy in range(3):
            for dx in range(3):
                for ox in range(W):
                    B[dy,
                      (ox + dx) * cin:(ox + dx + 1) * cin,
                      ox * cout:(ox + 1) * cout] = w_hwio[dy, dx]
        weights.append(jnp.asarray(B, jnp.bfloat16))
        biases.append(jnp.asarray(np.tile(bias, W)[None, :], jnp.float32))
        channels.append(cout)
        relus.append(bool(L["relu"]))
    return dict(weights=weights, biases=biases,
                channels=tuple(channels), relus=tuple(relus))


def _reference(x_nchw, layers):
    """Plain-JAX mirror of the PyTorch module (eval-mode BN), f32 HIGHEST."""
    y = x_nchw
    for L in layers:
        y = jax.lax.conv_general_dilated(
            y, L["w"], window_strides=(1, 1), padding=((1, 1), (1, 1)),
            dimension_numbers=("NCHW", "OIHW", "NCHW"),
            precision=jax.lax.Precision.HIGHEST)
        if L["gamma"] is not None:
            scale = L["gamma"] / jnp.sqrt(1.0 + _BN_EPS)
            y = y * scale[None, :, None, None] + L["beta"][None, :, None, None]
        if L["relu"]:
            y = jnp.maximum(y, 0.0)
    return x_nchw + y


if __name__ == "__main__":
    # Module shapes (NCHW, like the PyTorch spec): (2, 4, 16, 16).
    N, C, H, W = 2, 4, 16, 16
    filters, depth, use_bnorm = 8, 3, True

    key = jax.random.PRNGKey(0)
    kx, kp = jax.random.split(key)
    x = jax.random.normal(kx, (N, C, H, W), jnp.float32)

    params = init_dncnn_params(kp, C, filters, depth, use_bnorm)
    kparams = prepare_kernel_params(params, W)

    out = jax.block_until_ready(dncnn_residual_block(x, kparams))
    ref = jax.block_until_ready(_reference(x, params))

    assert out.shape == (N, C, H, W)
    # Tolerance reflects bf16 MXU inputs (per the perf review): ~2^-9 relative
    # quantization per factor through a depth-3, K<=72 conv stack gives a
    # worst-element error of a few 1e-3; 1e-2 leaves comfortable headroom.
    max_err = float(jnp.max(jnp.abs(out - ref)))
    assert jnp.allclose(out, ref, atol=1e-2, rtol=1e-2), f"max|err|={max_err}"
    print("KERNEL_OK")
</pallas_src>

<mosaic_0001>
module attributes {stable_mosaic.version = 11 : i64} {
  func.func @_dncnn_block_kernel(%arg0: i32, %arg1: memref<1x16x64xf32, #tpu.memory_space<vmem>>, %arg2: memref<3x72x128xbf16, #tpu.memory_space<vmem>>, %arg3: memref<1x128xf32, #tpu.memory_space<vmem>>, %arg4: memref<3x144x128xbf16, #tpu.memory_space<vmem>>, %arg5: memref<1x128xf32, #tpu.memory_space<vmem>>, %arg6: memref<3x144x64xbf16, #tpu.memory_space<vmem>>, %arg7: memref<1x64xf32, #tpu.memory_space<vmem>>, %arg8: memref<1x16x64xf32, #tpu.memory_space<vmem>>, %arg9: memref<18x144xbf16, #tpu.memory_space<vmem>>, %arg10: memref<18x144xbf16, #tpu.memory_space<vmem>>) attributes {dimension_semantics = [#tpu.dimension_semantics<parallel>], iteration_bounds = array<i64: 2>, scalar_prefetch = 0 : i64, scratch_operands = 2 : i64, tpu.core_type = #tpu.core_type<tc>, window_params = [{transform_indices = @transform_0, window_bounds = array<i64: 1, 16, 64>}, {pipeline_mode = #tpu.pipeline_mode<synchronous>, transform_indices = @transform_1, window_bounds = array<i64: 3, 72, 128>}, {pipeline_mode = #tpu.pipeline_mode<synchronous>, transform_indices = @transform_2, window_bounds = array<i64: 1, 128>}, {pipeline_mode = #tpu.pipeline_mode<synchronous>, transform_indices = @transform_3, window_bounds = array<i64: 3, 144, 128>}, {pipeline_mode = #tpu.pipeline_mode<synchronous>, transform_indices = @transform_4, window_bounds = array<i64: 1, 128>}, {pipeline_mode = #tpu.pipeline_mode<synchronous>, transform_indices = @transform_5, window_bounds = array<i64: 3, 144, 64>}, {pipeline_mode = #tpu.pipeline_mode<synchronous>, transform_indices = @transform_6, window_bounds = array<i64: 1, 64>}, {transform_indices = @transform_7, window_bounds = array<i64: 1, 16, 64>}]} {
    %cst = arith.constant 0.000000e+00 : bf16
    %0 = vector.broadcast %cst : bf16 to vector<1x144xbf16>
    %c0 = arith.constant 0 : index
    %c0_0 = arith.constant 0 : index
    %1 = vector.load %arg9[%c0, %c0_0] : memref<18x144xbf16, #tpu.memory_space<vmem>>, vector<1x144xbf16>
    tpu.vector_store %arg9[%c0, %c0_0], %0 {strides = array<i32>} : memref<18x144xbf16, #tpu.memory_space<vmem>>, vector<1x144xbf16>,
    %cst_1 = arith.constant 0.000000e+00 : bf16
    %2 = vector.broadcast %cst_1 : bf16 to vector<1x144xbf16>
    %c17 = arith.constant 17 : index
    %c0_2 = arith.constant 0 : index
    %3 = vector.load %arg9[%c17, %c0_2] : memref<18x144xbf16, #tpu.memory_space<vmem>>, vector<1x144xbf16>
    tpu.vector_store %arg9[%c17, %c0_2], %2 {strides = array<i32>} : memref<18x144xbf16, #tpu.memory_space<vmem>>, vector<1x144xbf16>,
    %cst_3 = arith.constant 0.000000e+00 : bf16
    %4 = vector.broadcast %cst_3 : bf16 to vector<1x144xbf16>
    %c0_4 = arith.constant 0 : index
    %c0_5 = arith.constant 0 : index
    %5 = vector.load %arg10[%c0_4, %c0_5] : memref<18x144xbf16, #tpu.memory_space<vmem>>, vector<1x144xbf16>
    tpu.vector_store %arg10[%c0_4, %c0_5], %4 {strides = array<i32>} : memref<18x144xbf16, #tpu.memory_space<vmem>>, vector<1x144xbf16>,
    %cst_6 = arith.constant 0.000000e+00 : bf16
    %6 = vector.broadcast %cst_6 : bf16 to vector<1x144xbf16>
    %c17_7 = arith.constant 17 : index
    %c0_8 = arith.constant 0 : index
    %7 = vector.load %arg10[%c17_7, %c0_8] : memref<18x144xbf16, #tpu.memory_space<vmem>>, vector<1x144xbf16>
    tpu.vector_store %arg10[%c17_7, %c0_8], %6 {strides = array<i32>} : memref<18x144xbf16, #tpu.memory_space<vmem>>, vector<1x144xbf16>,
    %c0_9 = arith.constant 0 : index
    %c0_10 = arith.constant 0 : index
    %c0_11 = arith.constant 0 : index
    %8 = vector.load %arg1[%c0_9, %c0_10, %c0_11] : memref<1x16x64xf32, #tpu.memory_space<vmem>>, vector<1x16x64xf32>
    %9 = vector.shape_cast %8 : vector<1x16x64xf32> to vector<16x64xf32>
    %cst_12 = arith.constant 0.000000e+00 : bf16
    %10 = vector.broadcast %cst_12 : bf16 to vector<16x4xbf16>
    %c1 = arith.constant 1 : index
    %c0_13 = arith.constant 0 : index
    %11 = vector.load %arg9[%c1, %c0_13] : memref<18x144xbf16, #tpu.memory_space<vmem>>, vector<16x4xbf16>
    tpu.vector_store %arg9[%c1, %c0_13], %10 {strides = array<i32>} : memref<18x144xbf16, #tpu.memory_space<vmem>>, vector<16x4xbf16>,
    %cst_14 = arith.constant 0.000000e+00 : bf16
    %12 = vector.broadcast %cst_14 : bf16 to vector<16x4xbf16>
    %c1_15 = arith.constant 1 : index
    %c68 = arith.constant 68 : index
    %13 = vector.load %arg9[%c1_15, %c68] : memref<18x144xbf16, #tpu.memory_space<vmem>>, vector<16x4xbf16>
    tpu.vector_store %arg9[%c1_15, %c68], %12 {strides = array<i32>} : memref<18x144xbf16, #tpu.memory_space<vmem>>, vector<16x4xbf16>,
    %14 = arith.truncf %9 : vector<16x64xf32> to vector<16x64xbf16>
    %c1_16 = arith.constant 1 : index
    %c4 = arith.constant 4 : index
    %15 = vector.load %arg9[%c1_16, %c4] : memref<18x144xbf16, #tpu.memory_space<vmem>>, vector<16x64xbf16>
    tpu.vector_store %arg9[%c1_16, %c4], %14 {strides = array<i32>} : memref<18x144xbf16, #tpu.memory_space<vmem>>, vector<16x64xbf16>,
    %cst_17 = arith.constant 0.000000e+00 : f32
    %16 = vector.broadcast %cst_17 : f32 to vector<16x128xf32>
    %c0_18 = arith.constant 0 : index
    %c0_19 = arith.constant 0 : index
    %17 = vector.load %arg9[%c0_18, %c0_19] : memref<18x144xbf16, #tpu.memory_space<vmem>>, vector<16x72xbf16>
    %c0_20 = arith.constant 0 : index
    %c0_21 = arith.constant 0 : index
    %c0_22 = arith.constant 0 : index
    %18 = vector.load %arg2[%c0_20, %c0_21, %c0_22] : memref<3x72x128xbf16, #tpu.memory_space<vmem>>, vector<1x72x128xbf16>
    %19 = vector.shape_cast %18 : vector<1x72x128xbf16> to vector<72x128xbf16>
    %cst_23 = arith.constant dense<0.000000e+00> : vector<16x128xf32>
    %20 = tpu.matmul %17, %19, %cst_23 {dimension_numbers = #tpu.dot_dimension_numbers<[1], [0], [0], [1], [0, 0, 1, 1], [], []>} : vector<16x72xbf16>, vector<72x128xbf16>, vector<16x128xf32> -> vector<16x128xf32>
    %21 = arith.addf %16, %20 : vector<16x128xf32>
    %c1_24 = arith.constant 1 : index
    %c0_25 = arith.constant 0 : index
    %22 = vector.load %arg9[%c1_24, %c0_25] : memref<18x144xbf16, #tpu.memory_space<vmem>>, vector<16x72xbf16>
    %c1_26 = arith.constant 1 : index
    %c0_27 = arith.constant 0 : index
    %c0_28 = arith.constant 0 : index
    %23 = vector.load %arg2[%c1_26, %c0_27, %c0_28] : memref<3x72x128xbf16, #tpu.memory_space<vmem>>, vector<1x72x128xbf16>
    %24 = vector.shape_cast %23 : vector<1x72x128xbf16> to vector<72x128xbf16>
    %cst_29 = arith.constant dense<0.000000e+00> : vector<16x128xf32>
    %25 = tpu.matmul %22, %24, %cst_29 {dimension_numbers = #tpu.dot_dimension_numbers<[1], [0], [0], [1], [0, 0, 1, 1], [], []>} : vector<16x72xbf16>, vector<72x128xbf16>, vector<16x128xf32> -> vector<16x128xf32>
    %26 = arith.addf %21, %25 : vector<16x128xf32>
    %c2 = arith.constant 2 : index
    %c0_30 = arith.constant 0 : index
    %27 = vector.load %arg9[%c2, %c0_30] : memref<18x144xbf16, #tpu.memory_space<vmem>>, vector<16x72xbf16>
    %c2_31 = arith.constant 2 : index
    %c0_32 = arith.constant 0 : index
    %c0_33 = arith.constant 0 : index
    %28 = vector.load %arg2[%c2_31, %c0_32, %c0_33] : memref<3x72x128xbf16, #tpu.memory_space<vmem>>, vector<1x72x128xbf16>
    %29 = vector.shape_cast %28 : vector<1x72x128xbf16> to vector<72x128xbf16>
    %cst_34 = arith.constant dense<0.000000e+00> : vector<16x128xf32>
    %30 = tpu.matmul %27, %29, %cst_34 {dimension_numbers = #tpu.dot_dimension_numbers<[1], [0], [0], [1], [0, 0, 1, 1], [], []>} : vector<16x72xbf16>, vector<72x128xbf16>, vector<16x128xf32> -> vector<16x128xf32>
    %31 = arith.addf %26, %30 : vector<16x128xf32>
    %c0_35 = arith.constant 0 : index
    %c0_36 = arith.constant 0 : index
    %32 = vector.load %arg3[%c0_35, %c0_36] : memref<1x128xf32, #tpu.memory_space<vmem>>, vector<1x128xf32>
    %33 = vector.broadcast %32 : vector<1x128xf32> to vector<16x128xf32>
    %34 = arith.addf %31, %33 : vector<16x128xf32>
    %cst_37 = arith.constant 0.000000e+00 : f32
    %35 = vector.broadcast %cst_37 : f32 to vector<16x128xf32>
    %36 = arith.maximumf %34, %35 : vector<16x128xf32>
    %cst_38 = arith.constant 0.000000e+00 : bf16
    %37 = vector.broadcast %cst_38 : bf16 to vector<16x8xbf16>
    %c1_39 = arith.constant 1 : index
    %c0_40 = arith.constant 0 : index
    %38 = vector.load %arg10[%c1_39, %c0_40] : memref<18x144xbf16, #tpu.memory_space<vmem>>, vector<16x8xbf16>
    tpu.vector_store %arg10[%c1_39, %c0_40], %37 {strides = array<i32>} : memref<18x144xbf16, #tpu.memory_space<vmem>>, vector<16x8xbf16>,
    %cst_41 = arith.constant 0.000000e+00 : bf16
    %39 = vector.broadcast %cst_41 : bf16 to vector<16x8xbf16>
    %c1_42 = arith.constant 1 : index
    %c136 = arith.constant 136 : index
    %40 = vector.load %arg10[%c1_42, %c136] : memref<18x144xbf16, #tpu.memory_space<vmem>>, vector<16x8xbf16>
    tpu.vector_store %arg10[%c1_42, %c136], %39 {strides = array<i32>} : memref<18x144xbf16, #tpu.memory_space<vmem>>, vector<16x8xbf16>,
    %41 = arith.truncf %36 : vector<16x128xf32> to vector<16x128xbf16>
    %c1_43 = arith.constant 1 : index
    %c8 = arith.constant 8 : index
    %42 = vector.load %arg10[%c1_43, %c8] : memref<18x144xbf16, #tpu.memory_space<vmem>>, vector<16x128xbf16>
    tpu.vector_store %arg10[%c1_43, %c8], %41 {strides = array<i32>} : memref<18x144xbf16, #tpu.memory_space<vmem>>, vector<16x128xbf16>,
    %cst_44 = arith.constant 0.000000e+00 : f32
    %43 = vector.broadcast %cst_44 : f32 to vector<16x128xf32>
    %c0_45 = arith.constant 0 : index
    %c0_46 = arith.constant 0 : index
    %44 = vector.load %arg10[%c0_45, %c0_46] : memref<18x144xbf16, #tpu.memory_space<vmem>>, vector<16x144xbf16>
    %c0_47 = arith.constant 0 : index
    %c0_48 = arith.constant 0 : index
    %c0_49 = arith.constant 0 : index
    %45 = vector.load %arg4[%c0_47, %c0_48, %c0_49] : memref<3x144x128xbf16, #tpu.memory_space<vmem>>, vector<1x144x128xbf16>
    %46 = vector.shape_cast %45 : vector<1x144x128xbf16> to vector<144x128xbf16>
    %cst_50 = arith.constant dense<0.000000e+00> : vector<16x128xf32>
    %47 = tpu.matmul %44, %46, %cst_50 {dimension_numbers = #tpu.dot_dimension_numbers<[1], [0], [0], [1], [0, 0, 1, 1], [], []>} : vector<16x144xbf16>, vector<144x128xbf16>, vector<16x128xf32> -> vector<16x128xf32>
    %48 = arith.addf %43, %47 : vector<16x128xf32>
    %c1_51 = arith.constant 1 : index
    %c0_52 = arith.constant 0 : index
    %49 = vector.load %arg10[%c1_51, %c0_52] : memref<18x144xbf16, #tpu.memory_space<vmem>>, vector<16x144xbf16>
    %c1_53 = arith.constant 1 : index
    %c0_54 = arith.constant 0 : index
    %c0_55 = arith.constant 0 : index
    %50 = vector.load %arg4[%c1_53, %c0_54, %c0_55] : memref<3x144x128xbf16, #tpu.memory_space<vmem>>, vector<1x144x128xbf16>
    %51 = vector.shape_cast %50 : vector<1x144x128xbf16> to vector<144x128xbf16>
    %cst_56 = arith.constant dense<0.000000e+00> : vector<16x128xf32>
    %52 = tpu.matmul %49, %51, %cst_56 {dimension_numbers = #tpu.dot_dimension_numbers<[1], [0], [0], [1], [0, 0, 1, 1], [], []>} : vector<16x144xbf16>, vector<144x128xbf16>, vector<16x128xf32> -> vector<16x128xf32>
    %53 = arith.addf %48, %52 : vector<16x128xf32>
    %c2_57 = arith.constant 2 : index
    %c0_58 = arith.constant 0 : index
    %54 = vector.load %arg10[%c2_57, %c0_58] : memref<18x144xbf16, #tpu.memory_space<vmem>>, vector<16x144xbf16>
    %c2_59 = arith.constant 2 : index
    %c0_60 = arith.constant 0 : index
    %c0_61 = arith.constant 0 : index
    %55 = vector.load %arg4[%c2_59, %c0_60, %c0_61] : memref<3x144x128xbf16, #tpu.memory_space<vmem>>, vector<1x144x128xbf16>
    %56 = vector.shape_cast %55 : vector<1x144x128xbf16> to vector<144x128xbf16>
    %cst_62 = arith.constant dense<0.000000e+00> : vector<16x128xf32>
    %57 = tpu.matmul %54, %56, %cst_62 {dimension_numbers = #tpu.dot_dimension_numbers<[1], [0], [0], [1], [0, 0, 1, 1], [], []>} : vector<16x144xbf16>, vector<144x128xbf16>, vector<16x128xf32> -> vector<16x128xf32>
    %58 = arith.addf %53, %57 : vector<16x128xf32>
    %c0_63 = arith.constant 0 : index
    %c0_64 = arith.constant 0 : index
    %59 = vector.load %arg5[%c0_63, %c0_64] : memref<1x128xf32, #tpu.memory_space<vmem>>, vector<1x128xf32>
    %60 = vector.broadcast %59 : vector<1x128xf32> to vector<16x128xf32>
    %61 = arith.addf %58, %60 : vector<16x128xf32>
    %cst_65 = arith.constant 0.000000e+00 : f32
    %62 = vector.broadcast %cst_65 : f32 to vector<16x128xf32>
    %63 = arith.maximumf %61, %62 : vector<16x128xf32>
    %cst_66 = arith.constant 0.000000e+00 : bf16
    %64 = vector.broadcast %cst_66 : bf16 to vector<16x8xbf16>
    %c1_67 = arith.constant 1 : index
    %c0_68 = arith.constant 0 : index
    %65 = vector.load %arg9[%c1_67, %c0_68] : memref<18x144xbf16, #tpu.memory_space<vmem>>, vector<16x8xbf16>
    tpu.vector_store %arg9[%c1_67, %c0_68], %64 {strides = array<i32>} : memref<18x144xbf16, #tpu.memory_space<vmem>>, vector<16x8xbf16>,
    %cst_69 = arith.constant 0.000000e+00 : bf16
    %66 = vector.broadcast %cst_69 : bf16 to vector<16x8xbf16>
    %c1_70 = arith.constant 1 : index
    %c136_71 = arith.constant 136 : index
    %67 = vector.load %arg9[%c1_70, %c136_71] : memref<18x144xbf16, #tpu.memory_space<vmem>>, vector<16x8xbf16>
    tpu.vector_store %arg9[%c1_70, %c136_71], %66 {strides = array<i32>} : memref<18x144xbf16, #tpu.memory_space<vmem>>, vector<16x8xbf16>,
    %68 = arith.truncf %63 : vector<16x128xf32> to vector<16x128xbf16>
    %c1_72 = arith.constant 1 : index
    %c8_73 = arith.constant 8 : index
    %69 = vector.load %arg9[%c1_72, %c8_73] : memref<18x144xbf16, #tpu.memory_space<vmem>>, vector<16x128xbf16>
    tpu.vector_store %arg9[%c1_72, %c8_73], %68 {strides = array<i32>} : memref<18x144xbf16, #tpu.memory_space<vmem>>, vector<16x128xbf16>,
    %cst_74 = arith.constant 0.000000e+00 : f32
    %70 = vector.broadcast %cst_74 : f32 to vector<16x64xf32>
    %c0_75 = arith.constant 0 : index
    %c0_76 = arith.constant 0 : index
    %71 = vector.load %arg9[%c0_75, %c0_76] : memref<18x144xbf16, #tpu.memory_space<vmem>>, vector<16x144xbf16>
    %c0_77 = arith.constant 0 : index
    %c0_78 = arith.constant 0 : index
    %c0_79 = arith.constant 0 : index
    %72 = vector.load %arg6[%c0_77, %c0_78, %c0_79] : memref<3x144x64xbf16, #tpu.memory_space<vmem>>, vector<1x144x64xbf16>
    %73 = vector.shape_cast %72 : vector<1x144x64xbf16> to vector<144x64xbf16>
    %cst_80 = arith.constant dense<0.000000e+00> : vector<16x64xf32>
    %74 = tpu.matmul %71, %73, %cst_80 {dimension_numbers = #tpu.dot_dimension_numbers<[1], [0], [0], [1], [0, 0, 1, 1], [], []>} : vector<16x144xbf16>, vector<144x64xbf16>, vector<16x64xf32> -> vector<16x64xf32>
    %75 = arith.addf %70, %74 : vector<16x64xf32>
    %c1_81 = arith.constant 1 : index
    %c0_82 = arith.constant 0 : index
    %76 = vector.load %arg9[%c1_81, %c0_82] : memref<18x144xbf16, #tpu.memory_space<vmem>>, vector<16x144xbf16>
    %c1_83 = arith.constant 1 : index
    %c0_84 = arith.constant 0 : index
    %c0_85 = arith.constant 0 : index
    %77 = vector.load %arg6[%c1_83, %c0_84, %c0_85] : memref<3x144x64xbf16, #tpu.memory_space<vmem>>, vector<1x144x64xbf16>
    %78 = vector.shape_cast %77 : vector<1x144x64xbf16> to vector<144x64xbf16>
    %cst_86 = arith.constant dense<0.000000e+00> : vector<16x64xf32>
    %79 = tpu.matmul %76, %78, %cst_86 {dimension_numbers = #tpu.dot_dimension_numbers<[1], [0], [0], [1], [0, 0, 1, 1], [], []>} : vector<16x144xbf16>, vector<144x64xbf16>, vector<16x64xf32> -> vector<16x64xf32>
    %80 = arith.addf %75, %79 : vector<16x64xf32>
    %c2_87 = arith.constant 2 : index
    %c0_88 = arith.constant 0 : index
    %81 = vector.load %arg9[%c2_87, %c0_88] : memref<18x144xbf16, #tpu.memory_space<vmem>>, vector<16x144xbf16>
    %c2_89 = arith.constant 2 : index
    %c0_90 = arith.constant 0 : index
    %c0_91 = arith.constant 0 : index
    %82 = vector.load %arg6[%c2_89, %c0_90, %c0_91] : memref<3x144x64xbf16, #tpu.memory_space<vmem>>, vector<1x144x64xbf16>
    %83 = vector.shape_cast %82 : vector<1x144x64xbf16> to vector<144x64xbf16>
    %cst_92 = arith.constant dense<0.000000e+00> : vector<16x64xf32>
    %84 = tpu.matmul %81, %83, %cst_92 {dimension_numbers = #tpu.dot_dimension_numbers<[1], [0], [0], [1], [0, 0, 1, 1], [], []>} : vector<16x144xbf16>, vector<144x64xbf16>, vector<16x64xf32> -> vector<16x64xf32>
    %85 = arith.addf %80, %84 : vector<16x64xf32>
    %c0_93 = arith.constant 0 : index
    %c0_94 = arith.constant 0 : index
    %86 = vector.load %arg7[%c0_93, %c0_94] : memref<1x64xf32, #tpu.memory_space<vmem>>, vector<1x64xf32>
    %87 = vector.broadcast %86 : vector<1x64xf32> to vector<16x64xf32>
    %88 = arith.addf %85, %87 : vector<16x64xf32>
    %c0_95 = arith.constant 0 : index
    %c0_96 = arith.constant 0 : index
    %c0_97 = arith.constant 0 : index
    %89 = vector.load %arg1[%c0_95, %c0_96, %c0_97] : memref<1x16x64xf32, #tpu.memory_space<vmem>>, vector<1x16x64xf32>
    %90 = vector.shape_cast %89 : vector<1x16x64xf32> to vector<16x64xf32>
    %91 = arith.addf %90, %88 : vector<16x64xf32>
    %c0_98 = arith.constant 0 : index
    %c0_99 = arith.constant 0 : index
    %c0_100 = arith.constant 0 : index
    %92 = vector.load %arg8[%c0_98, %c0_99, %c0_100] : memref<1x16x64xf32, #tpu.memory_space<vmem>>, vector<1x16x64xf32>
    %93 = vector.shape_cast %92 : vector<1x16x64xf32> to vector<16x64xf32>
    %94 = vector.shape_cast %91 : vector<16x64xf32> to vector<1x16x64xf32>
    tpu.vector_store %arg8[%c0_98, %c0_99, %c0_100], %94 {strides = array<i32>} : memref<1x16x64xf32, #tpu.memory_space<vmem>>, vector<1x16x64xf32>,
    return
  }
  func.func @transform_0(%arg0: i32) -> (i32, i32, i32) {
    %c0_i32 = arith.constant 0 : i32
    %c0_i32_0 = arith.constant 0 : i32
    %c0_i32_1 = arith.constant 0 : i32
    return %arg0, %c0_i32, %c0_i32_0 : i32, i32, i32
  }
  func.func @transform_1(%arg0: i32) -> (i32, i32, i32) {
    %c0_i32 = arith.constant 0 : i32
    %c0_i32_0 = arith.constant 0 : i32
    %c0_i32_1 = arith.constant 0 : i32
    %c0_i32_2 = arith.constant 0 : i32
    return %c0_i32, %c0_i32_0, %c0_i32_1 : i32, i32, i32
  }
  func.func @transform_2(%arg0: i32) -> (i32, i32) {
    %c0_i32 = arith.constant 0 : i32
    %c0_i32_0 = arith.constant 0 : i32
    %c0_i32_1 = arith.constant 0 : i32
    return %c0_i32, %c0_i32_0 : i32, i32
  }
  func.func @transform_3(%arg0: i32) -> (i32, i32, i32) {
    %c0_i32 = arith.constant 0 : i32
    %c0_i32_0 = arith.constant 0 : i32
    %c0_i32_1 = arith.constant 0 : i32
    %c0_i32_2 = arith.constant 0 : i32
    return %c0_i32, %c0_i32_0, %c0_i32_1 : i32, i32, i32
  }
  func.func @transform_4(%arg0: i32) -> (i32, i32) {
    %c0_i32 = arith.constant 0 : i32
    %c0_i32_0 = arith.constant 0 : i32
    %c0_i32_1 = arith.constant 0 : i32
    return %c0_i32, %c0_i32_0 : i32, i32
  }
  func.func @transform_5(%arg0: i32) -> (i32, i32, i32) {
    %c0_i32 = arith.constant 0 : i32
    %c0_i32_0 = arith.constant 0 : i32
    %c0_i32_1 = arith.constant 0 : i32
    %c0_i32_2 = arith.constant 0 : i32
    return %c0_i32, %c0_i32_0, %c0_i32_1 : i32, i32, i32
  }
  func.func @transform_6(%arg0: i32) -> (i32, i32) {
    %c0_i32 = arith.constant 0 : i32
    %c0_i32_0 = arith.constant 0 : i32
    %c0_i32_1 = arith.constant 0 : i32
    return %c0_i32, %c0_i32_0 : i32, i32
  }
  func.func @transform_7(%arg0: i32) -> (i32, i32, i32) {
    %c0_i32 = arith.constant 0 : i32
    %c0_i32_0 = arith.constant 0 : i32
    %c0_i32_1 = arith.constant 0 : i32
    return %arg0, %c0_i32, %c0_i32_0 : i32, i32, i32
  }
}

</mosaic_0001>

<llo_original>
// kernel: tpu_custom_call.1
$region0: #{tpu_custom_call.1}
  #allocation0 [shape = 'u32[]', space=smem, size = 0x4, offset = 0x4, fixed_abs, tag = 'smem constant byte address 0x4 - core index']
  #allocation1 [shape = 'u32[144,128]{1,0:T(1,128)}', space=vmem, size = 0x12000, scoped, tag = 'internal scratch']
  #allocation2 [shape = 'bf16[18,144]{1,0:T(8,128)(2,1)}', space=vmem, size = 0x3000, scoped, tag = 'scratch operand']
  #allocation3 [shape = 'bf16[18,144]{1,0:T(8,128)(2,1)}', space=vmem, size = 0x3000, scoped, tag = 'scratch operand']
  %s0 = inlined_call_operand.vmem [shape: f32[2,16,64], index: 0, kind: input, shape index: {}]
  %s1 = inlined_call_operand.vmem [shape: bf16[3,72,128], index: 1, kind: input, shape index: {}]
  %s2 = inlined_call_operand.vmem [shape: f32[1,128], index: 2, kind: input, shape index: {}]
  %s3 = inlined_call_operand.vmem [shape: bf16[3,144,128], index: 3, kind: input, shape index: {}]
  %s4 = inlined_call_operand.vmem [shape: f32[1,128], index: 4, kind: input, shape index: {}]
  %s5 = inlined_call_operand.vmem [shape: bf16[3,144,64], index: 5, kind: input, shape index: {}]
  %s6 = inlined_call_operand.vmem [shape: f32[1,64], index: 6, kind: input, shape index: {}]
  %s7 = inlined_call_operand.hbm [shape: f32[2,16,64], index: 7, kind: output, shape index: {}]
  %s8 = sld [smem:[#allocation0]]
  $region61: #{tpu_custom_call.1} parent=0
    _
  %s10 = ssub.s32 1, %s8
  %s11 = scalar_select 0, %s10, %s8
  $region1: #{tpu_custom_call.1} parent=0
    #allocation4 [shape = 'u8[16384]{0}', space=vmem, size = 0x4000, scoped, tag = 'output window, operand 0']
    #allocation5 [shape = 's32[2]{0}', space=sflag, size = 0x8, scoped, tag = 'scoped memory for tpu_custom_call.1']
    %12 = vsyncpa [#allocation5], 0
    %s13 = scalar_lea.sflag [#allocation5], 1
    %14 = vsyncpa %s13, 0
    loop: start=0, step=1, limit=4
    $region2: #{tpu_custom_call.1} parent=1 // loop_pre_header
      _
    $region3: #{tpu_custom_call.1} parent=1 // loop_header
      %s16 = sphi 0, %s20
      %p17 = scmp.ge.s32.totalorder %s16, 4
      %s26 = sphi 0, %s28
      %s29 = sphi 0, %s26
      %s30 = sphi 0, %s29
      %s46 = sphi 0, %s30
      %s50 = sphi 0, %s50
      %s52 = sphi 0, %s50
      %s53 = sphi 0, %s52
      %s67 = sphi 0, %s53
      %s71 = sphi 0, %s71
      %s73 = sphi 0, %s71
      %s74 = sphi 0, %s73
      %s88 = sphi 0, %s74
      %s92 = sphi 0, %s92
      %s94 = sphi 0, %s92
      %s95 = sphi 0, %s94
      %s109 = sphi 0, %s95
      %s113 = sphi 0, %s113
      %s115 = sphi 0, %s113
      %s116 = sphi 0, %s115
      %s130 = sphi 0, %s116
      %s134 = sphi 0, %s134
      %s136 = sphi 0, %s134
      %s137 = sphi 0, %s136
      %s151 = sphi 0, %s137
      %s155 = sphi 0, %s155
      %s157 = sphi 0, %s155
      %s158 = sphi 0, %s157
      %s172 = sphi 0, %s158
      %s178 = sphi 0, %s180
      %s181 = sphi 0, %s178
      %s182 = sphi 0, %s181
      %s198 = sphi 0, %s182
    $region4: #{tpu_custom_call.1} parent=1 // loop_header_branch
      %19 = sbr.rel (%p17) target = $region8
    $region5: #{tpu_custom_call.1} parent=1 // loop_body
      %s21 = ssub.s32 %s16, 1
      %s22 = ssub.s32 %s16, 2
      %s23 = sadd.s32 %s16, 1
      %s24 = ssub.s32 %s16, %s23
      %p25 = scmp.eq.s32.totalorder %s24, 0
      %s27 = sadd.s32 %s26, 1
      %s28 = scalar_select %p25, %s26, %s27
      %p31 = pneg %p25
      %p32 = scmp.eq.s32.totalorder %s16, 1
      %p33 = por %p31, %p32
      %p34 = scmp.ne.s32.totalorder %s26, %s29
      %p35 = scmp.eq.s32.totalorder %s16, 0
      %p36 = por %p34, %p35
      %p37 = scmp.ne.s32.totalorder %s26, %s29
      %p38 = scmp.eq.s32.totalorder %s21, 1
      %p39 = por %p37, %p38
      %p40 = scmp.ne.s32.totalorder %s29, %s30
      %p41 = scmp.eq.s32.totalorder %s21, 0
      %p42 = por %p40, %p41
      %p43 = scmp.ne.s32.totalorder %s29, %s30
      %p44 = scmp.eq.s32.totalorder %s22, 1
      %p45 = por %p43, %p44
      %p47 = scmp.ne.s32.totalorder %s30, %s46
      %p48 = scmp.eq.s32.totalorder %s22, 0
      %p49 = por %p47, %p48
      %s51 = sadd.s32 %s50, 1
      %p54 = scmp.eq.s32.totalorder %s16, 1
      %p55 = scmp.ne.s32.totalorder %s50, %s52
      %p56 = scmp.eq.s32.totalorder %s16, 0
      %p57 = por %p55, %p56
      %p58 = scmp.ne.s32.totalorder %s50, %s52
      %p59 = scmp.eq.s32.totalorder %s21, 1
      %p60 = por %p58, %p59
      %p61 = scmp.ne.s32.totalorder %s52, %s53
      %p62 = scmp.eq.s32.totalorder %s21, 0
      %p63 = por %p61, %p62
      %p64 = scmp.ne.s32.totalorder %s52, %s53
      %p65 = scmp.eq.s32.totalorder %s22, 1
      %p66 = por %p64, %p65
      %p68 = scmp.ne.s32.totalorder %s53, %s67
      %p69 = scmp.eq.s32.totalorder %s22, 0
      %p70 = por %p68, %p69
      %s72 = sadd.s32 %s71, 1
      %p75 = scmp.eq.s32.totalorder %s16, 1
      %p76 = scmp.ne.s32.totalorder %s71, %s73
      %p77 = scmp.eq.s32.totalorder %s16, 0
      %p78 = por %p76, %p77
      %p79 = scmp.ne.s32.totalorder %s71, %s73
      %p80 = scmp.eq.s32.totalorder %s21, 1
      %p81 = por %p79, %p80
      %p82 = scmp.ne.s32.totalorder %s73, %s74
      %p83 = scmp.eq.s32.totalorder %s21, 0
      %p84 = por %p82, %p83
      %p85 = scmp.ne.s32.totalorder %s73, %s74
      %p86 = scmp.eq.s32.totalorder %s22, 1
      %p87 = por %p85, %p86
      %p89 = scmp.ne.s32.totalorder %s74, %s88
      %p90 = scmp.eq.s32.totalorder %s22, 0
      %p91 = por %p89, %p90
      %s93 = sadd.s32 %s92, 1
      %p96 = scmp.eq.s32.totalorder %s16, 1
      %p97 = scmp.ne.s32.totalorder %s92, %s94
      %p98 = scmp.eq.s32.totalorder %s16, 0
      %p99 = por %p97, %p98
      %p100 = scmp.ne.s32.totalorder %s92, %s94
      %p101 = scmp.eq.s32.totalorder %s21, 1
      %p102 = por %p100, %p101
      %p103 = scmp.ne.s32.totalorder %s94, %s95
      %p104 = scmp.eq.s32.totalorder %s21, 0
      %p105 = por %p103, %p104
      %p106 = scmp.ne.s32.totalorder %s94, %s95
      %p107 = scmp.eq.s32.totalorder %s22, 1
      %p108 = por %p106, %p107
      %p110 = scmp.ne.s32.totalorder %s95, %s109
      %p111 = scmp.eq.s32.totalorder %s22, 0
      %p112 = por %p110, %p111
      %s114 = sadd.s32 %s113, 1
      %p117 = scmp.eq.s32.totalorder %s16, 1
      %p118 = scmp.ne.s32.totalorder %s113, %s115
      %p119 = scmp.eq.s32.totalorder %s16, 0
      %p120 = por %p118, %p119
      %p121 = scmp.ne.s32.totalorder %s113, %s115
      %p122 = scmp.eq.s32.totalorder %s21, 1
      %p123 = por %p121, %p122
      %p124 = scmp.ne.s32.totalorder %s115, %s116
      %p125 = scmp.eq.s32.totalorder %s21, 0
      %p126 = por %p124, %p125
      %p127 = scmp.ne.s32.totalorder %s115, %s116
      %p128 = scmp.eq.s32.totalorder %s22, 1
      %p129 = por %p127, %p128
      %p131 = scmp.ne.s32.totalorder %s116, %s130
      %p132 = scmp.eq.s32.totalorder %s22, 0
      %p133 = por %p131, %p132
      %s135 = sadd.s32 %s134, 1
      %p138 = scmp.eq.s32.totalorder %s16, 1
      %p139 = scmp.ne.s32.totalorder %s134, %s136
      %p140 = scmp.eq.s32.totalorder %s16, 0
      %p141 = por %p139, %p140
      %p142 = scmp.ne.s32.totalorder %s134, %s136
      %p143 = scmp.eq.s32.totalorder %s21, 1
      %p144 = por %p142, %p143
      %p145 = scmp.ne.s32.totalorder %s136, %s137
      %p146 = scmp.eq.s32.totalorder %s21, 0
      %p147 = por %p145, %p146
      %p148 = scmp.ne.s32.totalorder %s136, %s137
      %p149 = scmp.eq.s32.totalorder %s22, 1
      %p150 = por %p148, %p149
      %p152 = scmp.ne.s32.totalorder %s137, %s151
      %p153 = scmp.eq.s32.totalorder %s22, 0
      %p154 = por %p152, %p153
      %s156 = sadd.s32 %s155, 1
      %p159 = scmp.eq.s32.totalorder %s16, 1
      %p160 = scmp.ne.s32.totalorder %s155, %s157
      %p161 = scmp.eq.s32.totalorder %s16, 0
      %p162 = por %p160, %p161
      %p163 = scmp.ne.s32.totalorder %s155, %s157
      %p164 = scmp.eq.s32.totalorder %s21, 1
      %p165 = por %p163, %p164
      %p166 = scmp.ne.s32.totalorder %s157, %s158
      %p167 = scmp.eq.s32.totalorder %s21, 0
      %p168 = por %p166, %p167
      %p169 = scmp.ne.s32.totalorder %s157, %s158
      %p170 = scmp.eq.s32.totalorder %s22, 1
      %p171 = por %p169, %p170
      %p173 = scmp.ne.s32.totalorder %s158, %s172
      %p174 = scmp.eq.s32.totalorder %s22, 0
      %p175 = por %p173, %p174
      %s176 = ssub.s32 %s16, %s23
      %p177 = scmp.eq.s32.totalorder %s176, 0
      %s179 = sadd.s32 %s178, 1
      %s180 = scalar_select %p177, %s178, %s179
      %p183 = pneg %p177
      %p184 = scmp.eq.s32.totalorder %s16, 1
      %p185 = por %p183, %p184
      %p186 = scmp.ne.s32.totalorder %s178, %s181
      %p187 = scmp.eq.s32.totalorder %s16, 0
      %p188 = por %p186, %p187
      %p189 = scmp.ne.s32.totalorder %s178, %s181
      %p190 = scmp.eq.s32.totalorder %s21, 1
      %p191 = por %p189, %p190
      %p192 = scmp.ne.s32.totalorder %s181, %s182
      %p193 = scmp.eq.s32.totalorder %s21, 0
      %p194 = por %p192, %p193
      %p195 = scmp.ne.s32.totalorder %s181, %s182
      %p196 = scmp.eq.s32.totalorder %s22, 1
      %p197 = por %p195, %p196
      %p199 = scmp.ne.s32.totalorder %s182, %s198
      %p200 = scmp.eq.s32.totalorder %s22, 0
      %p201 = por %p199, %p200
      %p202 = scmp.le.s32.totalorder 1, %s16
      %p203 = scmp.lt.s32.totalorder %s16, 3
      %p204 = pnand %p202, %p203
      %p205 = pneg %p204
      // Predicated region
      $region9: #{tpu_custom_call.1} parent=5 // pred_check
        _
      $region10: #{tpu_custom_call.1} parent=5 // pred_check_branch
        %207 = sbr.rel (%p204) target = $region12
      $region11: #{tpu_custom_call.1} parent=5 // pred_region
        %s208 = ssub.s32 %s16, 1
        // Predicated region
        $region13: #{tpu_custom_call.1} parent=11 // pred_check
          %p209 = pneg %p63
        $region14: #{tpu_custom_call.1} parent=11 // pred_check_branch
          %211 = sbr.rel (%p209) target = $region16
        $region15: #{tpu_custom_call.1} parent=11 // pred_region
          _
        $region16: #{tpu_custom_call.1} parent=11 // pred_fallthru
          _
        // Predicated region
        $region17: #{tpu_custom_call.1} parent=11 // pred_check
          %p212 = pneg %p84
        $region18: #{tpu_custom_call.1} parent=11 // pred_check_branch
          %214 = sbr.rel (%p212) target = $region20
        $region19: #{tpu_custom_call.1} parent=11 // pred_region
          _
        $region20: #{tpu_custom_call.1} parent=11 // pred_fallthru
          _
        // Predicated region
        $region21: #{tpu_custom_call.1} parent=11 // pred_check
          %p215 = pneg %p105
        $region22: #{tpu_custom_call.1} parent=11 // pred_check_branch
          %217 = sbr.rel (%p215) target = $region24
        $region23: #{tpu_custom_call.1} parent=11 // pred_region
          _
        $region24: #{tpu_custom_call.1} parent=11 // pred_fallthru
          _
        // Predicated region
        $region25: #{tpu_custom_call.1} parent=11 // pred_check
          %p218 = pneg %p126
        $region26: #{tpu_custom_call.1} parent=11 // pred_check_branch
          %220 = sbr.rel (%p218) target = $region28
        $region27: #{tpu_custom_call.1} parent=11 // pred_region
          _
        $region28: #{tpu_custom_call.1} parent=11 // pred_fallthru
          _
        // Predicated region
        $region29: #{tpu_custom_call.1} parent=11 // pred_check
          %p221 = pneg %p147
        $region30: #{tpu_custom_call.1} parent=11 // pred_check_branch
          %223 = sbr.rel (%p221) target = $region32
        $region31: #{tpu_custom_call.1} parent=11 // pred_region
          _
        $region32: #{tpu_custom_call.1} parent=11 // pred_fallthru
          _
        // Predicated region
        $region33: #{tpu_custom_call.1} parent=11 // pred_check
          %p224 = pneg %p168
        $region34: #{tpu_custom_call.1} parent=11 // pred_check_branch
          %226 = sbr.rel (%p224) target = $region36
        $region35: #{tpu_custom_call.1} parent=11 // pred_region
          _
        $region36: #{tpu_custom_call.1} parent=11 // pred_fallthru
          _
      $region12: #{tpu_custom_call.1} parent=5 // pred_fallthru
        _
      %p227 = scmp.lt.s32.totalorder %s16, 2
      // Predicated region
      $region37: #{tpu_custom_call.1} parent=5 // pred_check
        %p228 = pneg %p227
      $region38: #{tpu_custom_call.1} parent=5 // pred_check_branch
        %230 = sbr.rel (%p228) target = $region40
      $region39: #{tpu_custom_call.1} parent=5 // pred_region
        // Predicated region
        $region41: #{tpu_custom_call.1} parent=39 // pred_check
          %p231 = pneg %p36
        $region42: #{tpu_custom_call.1} parent=39 // pred_check_branch
          %233 = sbr.rel (%p231) target = $region44
        $region43: #{tpu_custom_call.1} parent=39 // pred_region
          %p234 = scmp.lt.s32.totalorder %s16, 1
          %s235 = scalar_select %p234, %s16, 1
          %s236 = smul.addr %s235, 2
          %s237 = smul.addr %s236, 8
          %s238 = scalar_lea.vmem %s0, %s237
        $region44: #{tpu_custom_call.1} parent=39 // pred_fallthru
          _
      $region40: #{tpu_custom_call.1} parent=5 // pred_fallthru
        _
      %p239 = scmp.le.s32.totalorder 1, %s16
      %p240 = scmp.lt.s32.totalorder %s16, 3
      %p241 = pnand %p239, %p240
      %p242 = pneg %p241
      // Predicated region
      $region45: #{tpu_custom_call.1} parent=5 // pred_check
        _
      $region46: #{tpu_custom_call.1} parent=5 // pred_check_branch
        %244 = sbr.rel (%p241) target = $region48
      $region47: #{tpu_custom_call.1} parent=5 // pred_region
        %s245 = ssub.s32 %s16, 1
        %p246 = scmp.lt.s32.totalorder %s21, 1
        %s247 = scalar_select %p246, %s21, 1
        %s248 = smul.addr %s247, 2
        %s249 = smul.addr %s248, 8
        %s250 = scalar_lea.vmem %s0, %s249
        %p251 = pneg %p42
        %p252 = pneg %p39
        %p253 = pneg %p63
        %p254 = pneg %p60
        %p255 = pneg %p84
        %p256 = pneg %p81
        %p257 = pneg %p105
        %p258 = pneg %p102
        %p259 = pneg %p126
        %p260 = pneg %p123
        %p261 = pneg %p147
        %p262 = pneg %p144
        %p263 = pneg %p168
        %p264 = pneg %p165
        %p265 = pneg %p194
        %p266 = pneg %p191
        %s267 = sand.u32 %s181, 1
        %s268 = scalar_lea.sflag [#allocation5], %s267
        %s269 = sand.u32 %s181, 1
        %s270 = smul.addr %s269, 16
        %s271 = scalar_lea.vmem [#allocation4], %s270
        %p272 = scmp.lt.s32.totalorder %s21, 1
        %s273 = scalar_select %p272, %s21, 1
        %s274 = smul.addr %s273, 2
        %s275 = smul.addr %s274, 8
        %s276 = scalar_lea.vmem %s0, %s275
        %vm278 = vcmask 1040384
        %vm279 = vsmask.f32 256
        %vm280 = vmand %vm278, %vm279
        %vm281 = vcmask 126980
        %vm282 = vsmask.f32 4352
        %vm283 = vmand %vm281, %vm282
        %vm284 = vmor %vm283, %vm280
        %v285 = vld [vmem:[#allocation2] sm:$0x11]
        %v286 = vsel %vm284, 0, %v285
        %287 = vst [vmem:[#allocation2] sm:$0x11] %v286
        %vm288 = vsmask.f32 7938
        %vm289 = vmand %vm278, %vm288
        %vm290 = vsmask.f32 7954
        %vm291 = vmand %vm281, %vm290
        %vm292 = vmor %vm291, %vm289
        %v293 = vld [vmem:[#allocation2 + $0x10] sm:$0x11]
        %v294 = vsel %vm292, 0, %v293
        %295 = vst [vmem:[#allocation2 + $0x10] sm:$0x11] %v294
        %v296 = vld [vmem:[#allocation3] sm:$0x11]
        %v297 = vsel %vm284, 0, %v296
        %298 = vst [vmem:[#allocation3] sm:$0x11] %v297
        %v299 = vld [vmem:[#allocation3 + $0x10] sm:$0x11]
        %v300 = vsel %vm292, 0, %v299
        %301 = vst [vmem:[#allocation3 + $0x10] sm:$0x11] %v300
        %v302 = vld [vmem:[%s276] sm:$0xff]
        %v303 = vld [vmem:[%s276 + $0x8] sm:$0xff]
        %vm304 = vcmask 27648
        %vm305 = vmand %vm304, %vm288
        %v306 = vld [vmem:[#allocation2] sm:$0xf]
        %v307 = vsel %vm305, 0, %v306
        %308 = vst [vmem:[#allocation2] sm:$0xf] %v307
        %vm309 = vcmask 27648
        %310 = vst.msk [vmem:[#allocation2 + $0x8] sm:$0xf] %vm309, 0
        %vm311 = vcmask 24576
        %vm312 = vmand %vm311, %vm279
        %v313 = vld [vmem:[#allocation2 + $0x10] sm:$0x1]
        %v314 = vsel %vm312, 0, %v313
        %315 = vst [vmem:[#allocation2 + $0x10] sm:$0x1] %v314
        %vm316 = vcmask 585248
        %vm317 = vmand %vm316, %vm288
        %v318 = vld [vmem:[#allocation2] sm:$0xf]
        %v319 = vsel %vm317, 0, %v318
        %320 = vst [vmem:[#allocation2] sm:$0xf] %v319
        %vm321 = vcmask 585248
        %322 = vst.msk [vmem:[#allocation2 + $0x8] sm:$0xf] %vm321, 0
        %vm323 = vcmask 582176
        %vm324 = vmand %vm323, %vm279
        %v325 = vld [vmem:[#allocation2 + $0x10] sm:$0x1]
        %v326 = vsel %vm324, 0, %v325
        %327 = vst [vmem:[#allocation2 + $0x10] sm:$0x1] %v326
        %v328 = vpack.c.bf16 %v303, %v302
        %v330 = vunpack.c.l.b16 %v328
        %v331 = vunpack.c.h.b16 %v328
        %v332 = vpack.c.b16 %v330, %v330
        %v333 = vpack.c.b16 %v331, %v331
        %vm334 = vsmask.f32 4368
        %vm335 = vmor %vm279, %vm334
        %v337 = vshrl.u32 %v332, 16
        %v339 = vrot.slane %v337, 7
        %v340 = vshll.u32 %v332, 16
        %v342 = vor.u32 %v339, %v340
        %v343 = vrot.slane %v339, 4
        %v345 = vshrl.u32 %v333, 16
        %v347 = vrot.slane %v345, 7
        %v348 = vshll.u32 %v333, 16
        %v350 = vor.u32 %v347, %v348
        %v351 = vsel %vm335, %v343, %v350
        %v352 = vrot.slane %v347, 4
        %353 = vrot.lane.b32.xlu0 %v342, 4
        %v354 = vpop.permute.xlu0 %353
        %355 = vrot.lane.b32.xlu0 %v351, 4
        %v356 = vpop.permute.xlu0 %355
        %357 = vrot.lane.b32.xlu0 %v352, 4
        %v358 = vpop.permute.xlu0 %357
        %vm362 = vcmask 551968
        %vm363 = vmand %vm362, %vm288
        %v364 = vld [vmem:[#allocation2] sm:$0xf]
        %v365 = vsel %vm363, %v354, %v364
        %366 = vst [vmem:[#allocation2] sm:$0xf] %v365
        %vm367 = vcmask 551968
        %368 = vst.msk [vmem:[#allocation2 + $0x8] sm:$0xf] %vm367, %v356
        %vm369 = vcmask 548896
        %vm370 = vmand %vm369, %vm279
        %v371 = vld [vmem:[#allocation2 + $0x10] sm:$0x1]
        %v372 = vsel %vm370, %v358, %v371
        %373 = vst [vmem:[#allocation2 + $0x10] sm:$0x1] %v372
        %v374 = vld [vmem:[#allocation2] sm:$0xf]
        %v375 = vld [vmem:[#allocation2 + $0x8] sm:$0xf]
        %v376 = vld [vmem:[%s1] sm:$0xf]
        %v377 = vld [vmem:[%s1 + $0x4] sm:$0xf]
        %v378 = vld [vmem:[%s1 + $0x8] sm:$0xf]
        %v379 = vld [vmem:[%s1 + $0xc] sm:$0xf]
        %v380 = vld [vmem:[%s1 + $0x10] sm:$0xf]
        %v381 = vld [vmem:[%s1 + $0x14] sm:$0xf]
        %v382 = vld [vmem:[%s1 + $0x18] sm:$0xf]
        %v383 = vld [vmem:[%s1 + $0x1c] sm:$0xf]
        %v384 = vld [vmem:[%s1 + $0x20] sm:$0xf]
        %v385 = vld [vmem:[#allocation2 + $0x10] sm:$0x1]
        %s386 = scalar_lea.vmem %s1, 36
        %v387 = vld [vmem:[%s386] sm:$0xf]
        %v388 = vld [vmem:[%s386 + $0x4] sm:$0xf]
        %v389 = vld [vmem:[%s386 + $0x8] sm:$0xf]
        %v390 = vld [vmem:[%s386 + $0xc] sm:$0xf]
        %v391 = vld [vmem:[%s386 + $0x10] sm:$0xf]
        %v392 = vld [vmem:[%s386 + $0x14] sm:$0xf]
        %v393 = vld [vmem:[%s386 + $0x18] sm:$0xf]
        %v394 = vld [vmem:[%s386 + $0x1c] sm:$0xf]
        %v395 = vld [vmem:[%s386 + $0x20] sm:$0xf]
        %v399 = vunpack.c.l.b16 %v374
        %v400 = vunpack.c.l.b16 %v375
        %v401 = vunpack.c.l.b16 %v385
        %v402 = vpack.c.b16 %v400, %v399
        %v403 = vpack.c.b16 %v401, %v401
        %vm404 = vsmask.f32 7424
        %v406 = vshrl.u32 %v402, 16
        %v408 = vshll.u32 %v402, 16
        %v410 = vrot.slane %v408, 1
        %v411 = vor.u32 %v406, %v410
        %v413 = vshll.u32 %v403, 16
        %v415 = vrot.slane %v413, 1
        %v416 = vsel %vm404, %v411, %v415
        %v426 = vunpack.c.l.b16 %v387
        %v427 = vunpack.c.l.b16 %v388
        %v428 = vunpack.c.l.b16 %v389
        %v429 = vunpack.c.l.b16 %v390
        %v430 = vunpack.c.l.b16 %v391
        %v431 = vunpack.c.l.b16 %v392
        %v432 = vunpack.c.l.b16 %v393
        %v433 = vunpack.c.l.b16 %v394
        %v434 = vunpack.c.l.b16 %v395
        %v435 = vpack.c.b16 %v427, %v426
        %v436 = vpack.c.b16 %v429, %v428
        %v437 = vpack.c.b16 %v431, %v430
        %v438 = vpack.c.b16 %v433, %v432
        %v439 = vpack.c.b16 %v434, %v434
        %vm444 = vcmask 588800
        %v446 = vsel %vm444, %v416, 0
        %vm448 = vcmask 1043456
        %v450 = vsel %vm448, %v439, 0
        %452 = vmatprep.subr.bf16.mxu0 0
        %453 = vmatpush1.bf16.msra.mxu0 %v435
        %454 = vmatprep.subr.bf16.mxu0 0
        %455 = vmatpush1.bf16.msra.mxu0 %v436
        %456 = vmatprep.subr.bf16.mxu0 0
        %457 = vmatpush1.bf16.msra.mxu0 %v437
        %458 = vmatprep.subr.bf16.mxu0 0
        %459 = vmatpush1.bf16.msra.mxu0 %v438
        %460 = vmatprep.subr.bf16.mxu0 0
        %461 = vmatpush1.bf16.msra.mxu0 %v450
        %462 = vmatprep.subr.bf16.mxu0 0
        %463 = vmatpush1.bf16.msra.mxu0 0
        %464 = vmatprep.subr.bf16.mxu0 0
        %465 = vmatpush1.bf16.msra.mxu0 0
        %466 = vmatprep.subr.bf16.mxu0 0
        %467 = vmatpush1.bf16.msra.mxu0 0
        %468 = vmatprep.subr.bf16.mxu0 0
        %469 = vmatpush1.bf16.msra.mxu0 0
        %470 = vmatprep.subr.bf16.mxu0 0
        %471 = vmatpush1.bf16.msra.mxu0 0
        %472 = vmatprep.subr.bf16.mxu0 0
        %473 = vmatpush1.bf16.msra.mxu0 0
        %474 = vmatprep.subr.bf16.mxu0 0
        %475 = vmatpush1.bf16.msra.mxu0 0
        %476 = vmatprep.subr.bf16.mxu0 0
        %477 = vmatpush1.bf16.msra.mxu0 0
        %478 = vmatprep.subr.bf16.mxu0 0
        %479 = vmatpush1.bf16.msra.mxu0 0
        %480 = vmatprep.subr.bf16.mxu0 0
        %481 = vmatpush1.bf16.msra.mxu0 0
        %482 = vmatprep.subr.bf16.mxu0 0
        %483 = vmatpush1.bf16.msra.mxu0 0
        %484 = vmatprep.mubr.bf16.mxu0 0
        %485 = vmatmul.mubr.bf16.gmra.mrb[0].mxu0 %v446
        %v486 = vpop.f32.mrb[0].mxu0
        %v487 = vadd.f32 0.0, %v486
        %v488 = vpop.f32.mrb[0].mxu0
        %v489 = vpop.f32.mrb[0].mxu0
        %v490 = vadd.f32 0.0, %v489
        %v491 = vpop.f32.mrb[0].mxu0
        %492 = vdwg.mxu0
        %v502 = vunpack.c.l.b16 %v376
        %v503 = vunpack.c.l.b16 %v377
        %v504 = vunpack.c.l.b16 %v378
        %v505 = vunpack.c.l.b16 %v379
        %v506 = vunpack.c.l.b16 %v380
        %v507 = vunpack.c.l.b16 %v381
        %v508 = vunpack.c.l.b16 %v382
        %v509 = vunpack.c.l.b16 %v383
        %v510 = vunpack.c.l.b16 %v384
        %v511 = vpack.c.b16 %v503, %v502
        %v512 = vpack.c.b16 %v505, %v504
        %v513 = vpack.c.b16 %v507, %v506
        %v514 = vpack.c.b16 %v509, %v508
        %v515 = vpack.c.b16 %v510, %v510
        %v520 = vsel %vm444, %v402, 0
        %v523 = vsel %vm448, %v515, 0
        %525 = vmatprep.subr.bf16.mxu0 0
        %526 = vmatpush1.bf16.msra.mxu0 %v511
        %527 = vmatprep.subr.bf16.mxu0 0
        %528 = vmatpush1.bf16.msra.mxu0 %v512
        %529 = vmatprep.subr.bf16.mxu0 0
        %530 = vmatpush1.bf16.msra.mxu0 %v513
        %531 = vmatprep.subr.bf16.mxu0 0
        %532 = vmatpush1.bf16.msra.mxu0 %v514
        %533 = vmatprep.subr.bf16.mxu0 0
        %534 = vmatpush1.bf16.msra.mxu0 %v523
        %535 = vmatprep.subr.bf16.mxu0 0
        %536 = vmatpush1.bf16.msra.mxu0 0
        %537 = vmatprep.subr.bf16.mxu0 0
        %538 = vmatpush1.bf16.msra.mxu0 0
        %539 = vmatprep.subr.bf16.mxu0 0
        %540 = vmatpush1.bf16.msra.mxu0 0
        %541 = vmatprep.subr.bf16.mxu0 0
        %542 = vmatpush1.bf16.msra.mxu0 0
        %543 = vmatprep.subr.bf16.mxu0 0
        %544 = vmatpush1.bf16.msra.mxu0 0
        %545 = vmatprep.subr.bf16.mxu0 0
        %546 = vmatpush1.bf16.msra.mxu0 0
        %547 = vmatprep.subr.bf16.mxu0 0
        %548 = vmatpush1.bf16.msra.mxu0 0
        %549 = vmatprep.subr.bf16.mxu0 0
        %550 = vmatpush1.bf16.msra.mxu0 0
        %551 = vmatprep.subr.bf16.mxu0 0
        %552 = vmatpush1.bf16.msra.mxu0 0
        %553 = vmatprep.subr.bf16.mxu0 0
        %554 = vmatpush1.bf16.msra.mxu0 0
        %555 = vmatprep.subr.bf16.mxu0 0
        %556 = vmatpush1.bf16.msra.mxu0 0
        %557 = vmatprep.mubr.bf16.mxu0 0
        %558 = vmatmul.mubr.bf16.gmra.mrb[0].mxu0 %v520
        %v559 = vpop.f32.mrb[0].mxu0
        %v560 = vadd.f32 %v487, %v559
        %v561 = vpop.f32.mrb[0].mxu0
        %v562 = vpop.f32.mrb[0].mxu0
        %v563 = vadd.f32 %v490, %v562
        %v564 = vpop.f32.mrb[0].mxu0
        %565 = vdwg.mxu0
        %v566 = vld [vmem:[#allocation2] sm:$0xe]
        %s567 = scalar_lea.vmem %s1, 72
        %v568 = vld [vmem:[%s567] sm:$0xf]
        %v569 = vld [vmem:[%s567 + $0x4] sm:$0xf]
        %v570 = vld [vmem:[%s567 + $0x8] sm:$0xf]
        %v571 = vld [vmem:[%s567 + $0xc] sm:$0xf]
        %v572 = vld [vmem:[%s567 + $0x10] sm:$0xf]
        %v573 = vld [vmem:[%s567 + $0x14] sm:$0xf]
        %v574 = vld [vmem:[%s567 + $0x18] sm:$0xf]
        %v575 = vld [vmem:[%s567 + $0x1c] sm:$0xf]
        %v576 = vld [vmem:[%s567 + $0x20] sm:$0xf]
        %v578 = vunpack.c.l.b16 %v566
        %v579 = vpack.c.b16 %v400, %v578
        %vm580 = vcmask 1046528
        %v581 = vrot.slane %v579, 1
        %v582 = vrot.slane %v403, 1
        %v583 = vsel %vm580, %v581, %v582
        %v593 = vunpack.c.l.b16 %v568
        %v594 = vunpack.c.l.b16 %v569
        %v595 = vunpack.c.l.b16 %v570
        %v596 = vunpack.c.l.b16 %v571
        %v597 = vunpack.c.l.b16 %v572
        %v598 = vunpack.c.l.b16 %v573
        %v599 = vunpack.c.l.b16 %v574
        %v600 = vunpack.c.l.b16 %v575
        %v601 = vunpack.c.l.b16 %v576
        %v602 = vpack.c.b16 %v594, %v593
        %v603 = vpack.c.b16 %v596, %v595
        %v604 = vpack.c.b16 %v598, %v597
        %v605 = vpack.c.b16 %v600, %v599
        %v606 = vpack.c.b16 %v601, %v601
        %v612 = vsel %vm444, %v583, 0
        %v615 = vsel %vm448, %v606, 0
        %617 = vmatprep.subr.bf16.mxu0 0
        %618 = vmatpush1.bf16.msra.mxu0 %v602
        %619 = vmatprep.subr.bf16.mxu0 0
        %620 = vmatpush1.bf16.msra.mxu0 %v603
        %621 = vmatprep.subr.bf16.mxu0 0
        %622 = vmatpush1.bf16.msra.mxu0 %v604
        %623 = vmatprep.subr.bf16.mxu0 0
        %624 = vmatpush1.bf16.msra.mxu0 %v605
        %625 = vmatprep.subr.bf16.mxu0 0
        %626 = vmatpush1.bf16.msra.mxu0 %v615
        %627 = vmatprep.subr.bf16.mxu0 0
        %628 = vmatpush1.bf16.msra.mxu0 0
        %629 = vmatprep.subr.bf16.mxu0 0
        %630 = vmatpush1.bf16.msra.mxu0 0
        %631 = vmatprep.subr.bf16.mxu0 0
        %632 = vmatpush1.bf16.msra.mxu0 0
        %633 = vmatprep.subr.bf16.mxu0 0
        %634 = vmatpush1.bf16.msra.mxu0 0
        %635 = vmatprep.subr.bf16.mxu0 0
        %636 = vmatpush1.bf16.msra.mxu0 0
        %637 = vmatprep.subr.bf16.mxu0 0
        %638 = vmatpush1.bf16.msra.mxu0 0
        %639 = vmatprep.subr.bf16.mxu0 0
        %640 = vmatpush1.bf16.msra.mxu0 0
        %641 = vmatprep.subr.bf16.mxu0 0
        %642 = vmatpush1.bf16.msra.mxu0 0
        %643 = vmatprep.subr.bf16.mxu0 0
        %644 = vmatpush1.bf16.msra.mxu0 0
        %645 = vmatprep.subr.bf16.mxu0 0
        %646 = vmatpush1.bf16.msra.mxu0 0
        %647 = vmatprep.subr.bf16.mxu0 0
        %648 = vmatpush1.bf16.msra.mxu0 0
        %649 = vmatprep.mubr.bf16.mxu0 0
        %650 = vmatmul.mubr.bf16.gmra.mrb[0].mxu0 %v612
        %v651 = vpop.f32.mrb[0].mxu0
        %v652 = vadd.f32 0.0, %v651
        %v653 = vpop.f32.mrb[0].mxu0
        %v654 = vpop.f32.mrb[0].mxu0
        %v655 = vadd.f32 0.0, %v654
        %v656 = vpop.f32.mrb[0].mxu0
        %657 = vdwg.mxu0
        %v658 = vadd.f32 %v560, %v652
        %v659 = vadd.f32 %v563, %v655
        %v660 = vld [vmem:[%s2] sm:$0x1]
        %v662 = vlaneseq
        %v663 = vshrl.u32 %v662, 7
        %v664 = vsub.s32 0, %v663
        %v665 = vrot.slane %v660, %v664
        %v667 = vadd.f32 %v658, %v665
        %v668 = vadd.f32 %v659, %v665
        %v669 = vmax.f32 %v667, 0.0
        %v670 = vmax.f32 %v668, 0.0
        %vm671 = vcmask 60416
        %vm672 = vmand %vm671, %vm288
        %v673 = vld [vmem:[#allocation3] sm:$0xf]
        %v674 = vsel %vm672, 0, %v673
        %675 = vst [vmem:[#allocation3] sm:$0xf] %v674
        %vm676 = vcmask 60416
        %677 = vst.msk [vmem:[#allocation3 + $0x8] sm:$0xf] %vm676, 0
        %vm678 = vcmask 57344
        %vm679 = vmand %vm678, %vm279
        %v680 = vld [vmem:[#allocation3 + $0x10] sm:$0x1]
        %v681 = vsel %vm679, 0, %v680
        %682 = vst [vmem:[#allocation3 + $0x10] sm:$0x1] %v681
        %vm683 = vcmask 126016
        %vm684 = vmand %vm683, %vm288
        %v685 = vld [vmem:[#allocation3 + $0x4] sm:$0xf]
        %v686 = vsel %vm684, 0, %v685
        %687 = vst [vmem:[#allocation3 + $0x4] sm:$0xf] %v686
        %vm688 = vcmask 126016
        %689 = vst.msk [vmem:[#allocation3 + $0xc] sm:$0xf] %vm688, 0
        %vm690 = vcmask 122944
        %vm691 = vmand %vm690, %vm279
        %v692 = vld [vmem:[#allocation3 + $0x14] sm:$0x1]
        %v693 = vsel %vm691, 0, %v692
        %694 = vst [vmem:[#allocation3 + $0x14] sm:$0x1] %v693
        %v695 = vpack.c.bf16 %v670, %v669
        %v697 = vunpack.c.l.b16 %v695
        %v698 = vunpack.c.h.b16 %v695
        %v699 = vpack.c.b16 %v697, %v697
        %v700 = vpack.c.b16 %v698, %v698
        %v702 = vshrl.u32 %v699, 16
        %v704 = vrot.slane %v702, 7
        %v705 = vshll.u32 %v699, 16
        %v707 = vor.u32 %v704, %v705
        %v708 = vrot.slane %v704, 4
        %v710 = vshrl.u32 %v700, 16
        %v712 = vrot.slane %v710, 7
        %v713 = vshll.u32 %v700, 16
        %v715 = vor.u32 %v712, %v713
        %v716 = vsel %vm335, %v708, %v715
        %v717 = vrot.slane %v712, 4
        %718 = vrot.lane.b32.xlu0 %v707, 8
        %v719 = vpop.permute.xlu0 %718
        %720 = vrot.lane.b32.xlu0 %v716, 8
        %v721 = vpop.permute.xlu0 %720
        %722 = vrot.lane.b32.xlu0 %v717, 8
        %v723 = vpop.permute.xlu0 %722
        %v724 = vrot.slane %v719, 4
        %v725 = vrot.slane %v721, 4
        %v726 = vrot.slane %v723, 4
        %vm727 = vcmask 64512
        %v728 = vsel %vm727, %v724, %v719
        %v729 = vsel %vm727, %v725, %v721
        %v730 = vsel %vm727, %v726, %v723
        %vm734 = vcmask 1043520
        %vm735 = vmand %vm734, %vm288
        %vm736 = vcmask 64516
        %vm737 = vmand %vm736, %vm290
        %vm738 = vmor %vm737, %vm735
        %v739 = vld [vmem:[#allocation3] sm:$0xff]
        %v740 = vsel %vm738, %v728, %v739
        %741 = vst [vmem:[#allocation3] sm:$0xff] %v740
        %vm742 = vcmask 1043520
        %vm743 = vcmask 64516
        %vm744 = vmor %vm743, %vm742
        %745 = vst.msk [vmem:[#allocation3 + $0x8] sm:$0xff] %vm744, %v729
        %vm746 = vcmask 1040448
        %vm747 = vmand %vm746, %vm279
        %vm748 = vcmask 61444
        %vm749 = vmand %vm748, %vm282
        %vm750 = vmor %vm749, %vm747
        %v751 = vld [vmem:[#allocation3 + $0x10] sm:$0x11]
        %v752 = vsel %vm750, %v730, %v751
        %753 = vst [vmem:[#allocation3 + $0x10] sm:$0x11] %v752
        %v754 = vld [vmem:[#allocation3] sm:$0xff]
        %v755 = vld [vmem:[#allocation3 + $0x8] sm:$0xff]
        %v756 = vld [vmem:[%s3] sm:$0xf]
        %v757 = vld [vmem:[%s3 + $0x4] sm:$0xf]
        %v758 = vld [vmem:[%s3 + $0x8] sm:$0xf]
        %v759 = vld [vmem:[%s3 + $0xc] sm:$0xf]
        %v760 = vld [vmem:[%s3 + $0x10] sm:$0xf]
        %v761 = vld [vmem:[%s3 + $0x14] sm:$0xf]
        %v762 = vld [vmem:[%s3 + $0x18] sm:$0xf]
        %v763 = vld [vmem:[%s3 + $0x1c] sm:$0xf]
        %v764 = vld [vmem:[%s3 + $0x20] sm:$0xf]
        %v765 = vld [vmem:[%s3 + $0x24] sm:$0xf]
        %v766 = vld [vmem:[%s3 + $0x28] sm:$0xf]
        %v767 = vld [vmem:[%s3 + $0x2c] sm:$0xf]
        %v768 = vld [vmem:[%s3 + $0x30] sm:$0xf]
        %v769 = vld [vmem:[%s3 + $0x34] sm:$0xf]
        %v770 = vld [vmem:[%s3 + $0x38] sm:$0xf]
        %v771 = vld [vmem:[%s3 + $0x3c] sm:$0xf]
        %v772 = vld [vmem:[%s3 + $0x40] sm:$0xf]
        %v773 = vld [vmem:[%s3 + $0x44] sm:$0xf]
        %v774 = vld [vmem:[#allocation3 + $0x10] sm:$0x11]
        %s775 = scalar_lea.vmem %s3, 72
        %v776 = vld [vmem:[%s775] sm:$0xf]
        %v777 = vld [vmem:[%s775 + $0x4] sm:$0xf]
        %v778 = vld [vmem:[%s775 + $0x8] sm:$0xf]
        %v779 = vld [vmem:[%s775 + $0xc] sm:$0xf]
        %v780 = vld [vmem:[%s775 + $0x10] sm:$0xf]
        %v781 = vld [vmem:[%s775 + $0x14] sm:$0xf]
        %v782 = vld [vmem:[%s775 + $0x18] sm:$0xf]
        %v783 = vld [vmem:[%s775 + $0x1c] sm:$0xf]
        %v784 = vld [vmem:[%s775 + $0x20] sm:$0xf]
        %v785 = vld [vmem:[%s775 + $0x24] sm:$0xf]
        %v786 = vld [vmem:[%s775 + $0x28] sm:$0xf]
        %v787 = vld [vmem:[%s775 + $0x2c] sm:$0xf]
        %v788 = vld [vmem:[%s775 + $0x30] sm:$0xf]
        %v789 = vld [vmem:[%s775 + $0x34] sm:$0xf]
        %v790 = vld [vmem:[%s775 + $0x38] sm:$0xf]
        %v791 = vld [vmem:[%s775 + $0x3c] sm:$0xf]
        %v792 = vld [vmem:[%s775 + $0x40] sm:$0xf]
        %v793 = vld [vmem:[%s775 + $0x44] sm:$0xf]
        %v797 = vunpack.c.l.b16 %v754
        %v798 = vunpack.c.h.b16 %v754
        %v799 = vunpack.c.l.b16 %v755
        %v800 = vunpack.c.h.b16 %v755
        %v801 = vunpack.c.l.b16 %v774
        %v802 = vunpack.c.h.b16 %v774
        %v803 = vpack.c.b16 %v799, %v797
        %v804 = vpack.c.b16 %v800, %v798
        %v805 = vpack.c.b16 %v801, %v801
        %v806 = vpack.c.b16 %v802, %v802
        %v808 = vshrl.u32 %v803, 16
        %v810 = vshll.u32 %v803, 16
        %v812 = vrot.slane %v810, 1
        %v813 = vor.u32 %v808, %v812
        %v815 = vshll.u32 %v805, 16
        %v817 = vrot.slane %v815, 1
        %v818 = vsel %vm404, %v813, %v817
        %v820 = vshrl.u32 %v804, 16
        %v822 = vshll.u32 %v804, 16
        %v824 = vrot.slane %v822, 1
        %v825 = vor.u32 %v820, %v824
        %v827 = vshll.u32 %v806, 16
        %v829 = vrot.slane %v827, 1
        %v830 = vsel %vm404, %v825, %v829
        %v850 = vunpack.c.l.b16 %v776
        %v851 = vunpack.c.l.b16 %v777
        %v852 = vunpack.c.l.b16 %v778
        %v853 = vunpack.c.l.b16 %v779
        %v854 = vunpack.c.l.b16 %v780
        %v855 = vunpack.c.l.b16 %v781
        %v856 = vunpack.c.l.b16 %v782
        %v857 = vunpack.c.l.b16 %v783
        %v858 = vunpack.c.l.b16 %v784
        %v859 = vunpack.c.l.b16 %v785
        %v860 = vunpack.c.l.b16 %v786
        %v861 = vunpack.c.l.b16 %v787
        %v862 = vunpack.c.l.b16 %v788
        %v863 = vunpack.c.l.b16 %v789
        %v864 = vunpack.c.l.b16 %v790
        %v865 = vunpack.c.l.b16 %v791
        %v866 = vunpack.c.l.b16 %v792
        %v867 = vunpack.c.l.b16 %v793
        %v868 = vpack.c.b16 %v851, %v850
        %v869 = vpack.c.b16 %v853, %v852
        %v870 = vpack.c.b16 %v855, %v854
        %v871 = vpack.c.b16 %v857, %v856
        %v872 = vpack.c.b16 %v859, %v858
        %v873 = vpack.c.b16 %v861, %v860
        %v874 = vpack.c.b16 %v863, %v862
        %v875 = vpack.c.b16 %v865, %v864
        %v876 = vpack.c.b16 %v867, %v866
        %vm886 = vcmask 130048
        %v888 = vsel %vm886, %v830, 0
        %890 = vmatprep.subr.bf16.mxu0 0
        %891 = vmatpush1.bf16.msra.mxu0 %v868
        %892 = vmatprep.subr.bf16.mxu0 0
        %893 = vmatpush1.bf16.msra.mxu0 %v869
        %894 = vmatprep.subr.bf16.mxu0 0
        %895 = vmatpush1.bf16.msra.mxu0 %v870
        %896 = vmatprep.subr.bf16.mxu0 0
        %897 = vmatpush1.bf16.msra.mxu0 %v871
        %898 = vmatprep.subr.bf16.mxu0 0
        %899 = vmatpush1.bf16.msra.mxu0 %v872
        %900 = vmatprep.subr.bf16.mxu0 0
        %901 = vmatpush1.bf16.msra.mxu0 %v873
        %902 = vmatprep.subr.bf16.mxu0 0
        %903 = vmatpush1.bf16.msra.mxu0 %v874
        %904 = vmatprep.subr.bf16.mxu0 0
        %905 = vmatpush1.bf16.msra.mxu0 %v875
        %906 = vmatprep.subr.bf16.mxu0 0
        %907 = vmatpush1.bf16.msra.mxu0 %v876
        %908 = vmatprep.subr.bf16.mxu0 0
        %909 = vmatpush1.bf16.msra.mxu0 0
        %910 = vmatprep.subr.bf16.mxu0 0
        %911 = vmatpush1.bf16.msra.mxu0 0
        %912 = vmatprep.subr.bf16.mxu0 0
        %913 = vmatpush1.bf16.msra.mxu0 0
        %914 = vmatprep.subr.bf16.mxu0 0
        %915 = vmatpush1.bf16.msra.mxu0 0
        %916 = vmatprep.subr.bf16.mxu0 0
        %917 = vmatpush1.bf16.msra.mxu0 0
        %918 = vmatprep.subr.bf16.mxu0 0
        %919 = vmatpush1.bf16.msra.mxu0 0
        %920 = vmatprep.subr.bf16.mxu0 0
        %921 = vmatpush1.bf16.msra.mxu0 0
        %922 = vmatprep.mubr.bf16.mxu0 %v888
        %923 = vmatmul.mubr.bf16.gmra.mrb[0].mxu0 %v818
        %v924 = vpop.f32.mrb[0].mxu0
        %v925 = vadd.f32 0.0, %v924
        %v926 = vpop.f32.mrb[0].mxu0
        %v927 = vpop.f32.mrb[0].mxu0
        %v928 = vadd.f32 0.0, %v927
        %v929 = vpop.f32.mrb[0].mxu0
        %930 = vdwg.mxu0
        %v950 = vunpack.c.l.b16 %v756
        %v951 = vunpack.c.l.b16 %v757
        %v952 = vunpack.c.l.b16 %v758
        %v953 = vunpack.c.l.b16 %v759
        %v954 = vunpack.c.l.b16 %v760
        %v955 = vunpack.c.l.b16 %v761
        %v956 = vunpack.c.l.b16 %v762
        %v957 = vunpack.c.l.b16 %v763
        %v958 = vunpack.c.l.b16 %v764
        %v959 = vunpack.c.l.b16 %v765
        %v960 = vunpack.c.l.b16 %v766
        %v961 = vunpack.c.l.b16 %v767
        %v962 = vunpack.c.l.b16 %v768
        %v963 = vunpack.c.l.b16 %v769
        %v964 = vunpack.c.l.b16 %v770
        %v965 = vunpack.c.l.b16 %v771
        %v966 = vunpack.c.l.b16 %v772
        %v967 = vunpack.c.l.b16 %v773
        %v968 = vpack.c.b16 %v951, %v950
        %v969 = vpack.c.b16 %v953, %v952
        %v970 = vpack.c.b16 %v955, %v954
        %v971 = vpack.c.b16 %v957, %v956
        %v972 = vpack.c.b16 %v959, %v958
        %v973 = vpack.c.b16 %v961, %v960
        %v974 = vpack.c.b16 %v963, %v962
        %v975 = vpack.c.b16 %v965, %v964
        %v976 = vpack.c.b16 %v967, %v966
        %v986 = vsel %vm886, %v804, 0
        %988 = vmatprep.subr.bf16.mxu0 0
        %989 = vmatpush1.bf16.msra.mxu0 %v968
        %990 = vmatprep.subr.bf16.mxu0 0
        %991 = vmatpush1.bf16.msra.mxu0 %v969
        %992 = vmatprep.subr.bf16.mxu0 0
        %993 = vmatpush1.bf16.msra.mxu0 %v970
        %994 = vmatprep.subr.bf16.mxu0 0
        %995 = vmatpush1.bf16.msra.mxu0 %v971
        %996 = vmatprep.subr.bf16.mxu0 0
        %997 = vmatpush1.bf16.msra.mxu0 %v972
        %998 = vmatprep.subr.bf16.mxu0 0
        %999 = vmatpush1.bf16.msra.mxu0 %v973
        %1000 = vmatprep.subr.bf16.mxu0 0
        %1001 = vmatpush1.bf16.msra.mxu0 %v974
        %1002 = vmatprep.subr.bf16.mxu0 0
        %1003 = vmatpush1.bf16.msra.mxu0 %v975
        %1004 = vmatprep.subr.bf16.mxu0 0
        %1005 = vmatpush1.bf16.msra.mxu0 %v976
        %1006 = vmatprep.subr.bf16.mxu0 0
        %1007 = vmatpush1.bf16.msra.mxu0 0
        %1008 = vmatprep.subr.bf16.mxu0 0
        %1009 = vmatpush1.bf16.msra.mxu0 0
        %1010 = vmatprep.subr.bf16.mxu0 0
        %1011 = vmatpush1.bf16.msra.mxu0 0
        %1012 = vmatprep.subr.bf16.mxu0 0
        %1013 = vmatpush1.bf16.msra.mxu0 0
        %1014 = vmatprep.subr.bf16.mxu0 0
        %1015 = vmatpush1.bf16.msra.mxu0 0
        %1016 = vmatprep.subr.bf16.mxu0 0
        %1017 = vmatpush1.bf16.msra.mxu0 0
        %1018 = vmatprep.subr.bf16.mxu0 0
        %1019 = vmatpush1.bf16.msra.mxu0 0
        %1020 = vmatprep.mubr.bf16.mxu0 %v986
        %1021 = vmatmul.mubr.bf16.gmra.mrb[0].mxu0 %v803
        %v1022 = vpop.f32.mrb[0].mxu0
        %v1023 = vadd.f32 %v925, %v1022
        %v1024 = vpop.f32.mrb[0].mxu0
        %v1025 = vpop.f32.mrb[0].mxu0
        %v1026 = vadd.f32 %v928, %v1025
        %v1027 = vpop.f32.mrb[0].mxu0
        %1028 = vdwg.mxu0
        %v1029 = vld [vmem:[#allocation3] sm:$0xee]
        %s1030 = scalar_lea.vmem %s3, 144
        %v1031 = vld [vmem:[%s1030] sm:$0xf]
        %v1032 = vld [vmem:[%s1030 + $0x4] sm:$0xf]
        %v1033 = vld [vmem:[%s1030 + $0x8] sm:$0xf]
        %v1034 = vld [vmem:[%s1030 + $0xc] sm:$0xf]
        %v1035 = vld [vmem:[%s1030 + $0x10] sm:$0xf]
        %v1036 = vld [vmem:[%s1030 + $0x14] sm:$0xf]
        %v1037 = vld [vmem:[%s1030 + $0x18] sm:$0xf]
        %v1038 = vld [vmem:[%s1030 + $0x1c] sm:$0xf]
        %v1039 = vld [vmem:[%s1030 + $0x20] sm:$0xf]
        %v1040 = vld [vmem:[%s1030 + $0x24] sm:$0xf]
        %v1041 = vld [vmem:[%s1030 + $0x28] sm:$0xf]
        %v1042 = vld [vmem:[%s1030 + $0x2c] sm:$0xf]
        %v1043 = vld [vmem:[%s1030 + $0x30] sm:$0xf]
        %v1044 = vld [vmem:[%s1030 + $0x34] sm:$0xf]
        %v1045 = vld [vmem:[%s1030 + $0x38] sm:$0xf]
        %v1046 = vld [vmem:[%s1030 + $0x3c] sm:$0xf]
        %v1047 = vld [vmem:[%s1030 + $0x40] sm:$0xf]
        %v1048 = vld [vmem:[%s1030 + $0x44] sm:$0xf]
        %v1050 = vunpack.c.l.b16 %v1029
        %v1051 = vunpack.c.h.b16 %v1029
        %v1052 = vpack.c.b16 %v799, %v1050
        %v1053 = vpack.c.b16 %v800, %v1051
        %v1054 = vrot.slane %v1052, 1
        %v1055 = vrot.slane %v805, 1
        %v1056 = vsel %vm580, %v1054, %v1055
        %v1057 = vrot.slane %v1053, 1
        %v1058 = vrot.slane %v806, 1
        %v1059 = vsel %vm580, %v1057, %v1058
        %v1079 = vunpack.c.l.b16 %v1031
        %v1080 = vunpack.c.l.b16 %v1032
        %v1081 = vunpack.c.l.b16 %v1033
        %v1082 = vunpack.c.l.b16 %v1034
        %v1083 = vunpack.c.l.b16 %v1035
        %v1084 = vunpack.c.l.b16 %v1036
        %v1085 = vunpack.c.l.b16 %v1037
        %v1086 = vunpack.c.l.b16 %v1038
        %v1087 = vunpack.c.l.b16 %v1039
        %v1088 = vunpack.c.l.b16 %v1040
        %v1089 = vunpack.c.l.b16 %v1041
        %v1090 = vunpack.c.l.b16 %v1042
        %v1091 = vunpack.c.l.b16 %v1043
        %v1092 = vunpack.c.l.b16 %v1044
        %v1093 = vunpack.c.l.b16 %v1045
        %v1094 = vunpack.c.l.b16 %v1046
        %v1095 = vunpack.c.l.b16 %v1047
        %v1096 = vunpack.c.l.b16 %v1048
        %v1097 = vpack.c.b16 %v1080, %v1079
        %v1098 = vpack.c.b16 %v1082, %v1081
        %v1099 = vpack.c.b16 %v1084, %v1083
        %v1100 = vpack.c.b16 %v1086, %v1085
        %v1101 = vpack.c.b16 %v1088, %v1087
        %v1102 = vpack.c.b16 %v1090, %v1089
        %v1103 = vpack.c.b16 %v1092, %v1091
        %v1104 = vpack.c.b16 %v1094, %v1093
        %v1105 = vpack.c.b16 %v1096, %v1095
        %v1116 = vsel %vm886, %v1059, 0
        %1118 = vmatprep.subr.bf16.mxu0 0
        %1119 = vmatpush1.bf16.msra.mxu0 %v1097
        %1120 = vmatprep.subr.bf16.mxu0 0
        %1121 = vmatpush1.bf16.msra.mxu0 %v1098
        %1122 = vmatprep.subr.bf16.mxu0 0
        %1123 = vmatpush1.bf16.msra.mxu0 %v1099
        %1124 = vmatprep.subr.bf16.mxu0 0
        %1125 = vmatpush1.bf16.msra.mxu0 %v1100
        %1126 = vmatprep.subr.bf16.mxu0 0
        %1127 = vmatpush1.bf16.msra.mxu0 %v1101
        %1128 = vmatprep.subr.bf16.mxu0 0
        %1129 = vmatpush1.bf16.msra.mxu0 %v1102
        %1130 = vmatprep.subr.bf16.mxu0 0
        %1131 = vmatpush1.bf16.msra.mxu0 %v1103
        %1132 = vmatprep.subr.bf16.mxu0 0
        %1133 = vmatpush1.bf16.msra.mxu0 %v1104
        %1134 = vmatprep.subr.bf16.mxu0 0
        %1135 = vmatpush1.bf16.msra.mxu0 %v1105
        %1136 = vmatprep.subr.bf16.mxu0 0
        %1137 = vmatpush1.bf16.msra.mxu0 0
        %1138 = vmatprep.subr.bf16.mxu0 0
        %1139 = vmatpush1.bf16.msra.mxu0 0
        %1140 = vmatprep.subr.bf16.mxu0 0
        %1141 = vmatpush1.bf16.msra.mxu0 0
        %1142 = vmatprep.subr.bf16.mxu0 0
        %1143 = vmatpush1.bf16.msra.mxu0 0
        %1144 = vmatprep.subr.bf16.mxu0 0
        %1145 = vmatpush1.bf16.msra.mxu0 0
        %1146 = vmatprep.subr.bf16.mxu0 0
        %1147 = vmatpush1.bf16.msra.mxu0 0
        %1148 = vmatprep.subr.bf16.mxu0 0
        %1149 = vmatpush1.bf16.msra.mxu0 0
        %1150 = vmatprep.mubr.bf16.mxu0 %v1116
        %1151 = vmatmul.mubr.bf16.gmra.mrb[0].mxu0 %v1056
        %v1152 = vpop.f32.mrb[0].mxu0
        %v1153 = vadd.f32 0.0, %v1152
        %v1154 = vpop.f32.mrb[0].mxu0
        %v1155 = vpop.f32.mrb[0].mxu0
        %v1156 = vadd.f32 0.0, %v1155
        %v1157 = vpop.f32.mrb[0].mxu0
        %1158 = vdwg.mxu0
        %v1159 = vadd.f32 %v1023, %v1153
        %v1160 = vadd.f32 %v1026, %v1156
        %v1161 = vld [vmem:[%s4] sm:$0x1]
        %v1163 = vlaneseq
        %v1164 = vshrl.u32 %v1163, 7
        %v1165 = vsub.s32 0, %v1164
        %v1166 = vrot.slane %v1161, %v1165
        %v1168 = vadd.f32 %v1159, %v1166
        %v1169 = vadd.f32 %v1160, %v1166
        %v1170 = vmax.f32 %v1168, 0.0
        %v1171 = vmax.f32 %v1169, 0.0
        %v1172 = vld [vmem:[#allocation2] sm:$0xf]
        %v1173 = vsel %vm672, 0, %v1172
        %1174 = vst [vmem:[#allocation2] sm:$0xf] %v1173
        %1175 = vst.msk [vmem:[#allocation2 + $0x8] sm:$0xf] %vm676, 0
        %v1176 = vld [vmem:[#allocation2 + $0x10] sm:$0x1]
        %v1177 = vsel %vm679, 0, %v1176
        %1178 = vst [vmem:[#allocation2 + $0x10] sm:$0x1] %v1177
        %v1179 = vld [vmem:[#allocation2 + $0x4] sm:$0xf]
        %v1180 = vsel %vm684, 0, %v1179
        %1181 = vst [vmem:[#allocation2 + $0x4] sm:$0xf] %v1180
        %1182 = vst.msk [vmem:[#allocation2 + $0xc] sm:$0xf] %vm688, 0
        %v1183 = vld [vmem:[#allocation2 + $0x14] sm:$0x1]
        %v1184 = vsel %vm691, 0, %v1183
        %1185 = vst [vmem:[#allocation2 + $0x14] sm:$0x1] %v1184
        %v1186 = vpack.c.bf16 %v1171, %v1170
        %v1188 = vunpack.c.l.b16 %v1186
        %v1189 = vunpack.c.h.b16 %v1186
        %v1190 = vpack.c.b16 %v1188, %v1188
        %v1191 = vpack.c.b16 %v1189, %v1189
        %v1193 = vshrl.u32 %v1190, 16
        %v1195 = vrot.slane %v1193, 7
        %v1196 = vshll.u32 %v1190, 16
        %v1198 = vor.u32 %v1195, %v1196
        %v1199 = vrot.slane %v1195, 4
        %v1201 = vshrl.u32 %v1191, 16
        %v1203 = vrot.slane %v1201, 7
        %v1204 = vshll.u32 %v1191, 16
        %v1206 = vor.u32 %v1203, %v1204
        %v1207 = vsel %vm335, %v1199, %v1206
        %v1208 = vrot.slane %v1203, 4
        %1209 = vrot.lane.b32.xlu0 %v1198, 8
        %v1210 = vpop.permute.xlu0 %1209
        %1211 = vrot.lane.b32.xlu0 %v1207, 8
        %v1212 = vpop.permute.xlu0 %1211
        %1213 = vrot.lane.b32.xlu0 %v1208, 8
        %v1214 = vpop.permute.xlu0 %1213
        %v1215 = vrot.slane %v1210, 4
        %v1216 = vrot.slane %v1212, 4
        %v1217 = vrot.slane %v1214, 4
        %v1218 = vsel %vm727, %v1215, %v1210
        %v1219 = vsel %vm727, %v1216, %v1212
        %v1220 = vsel %vm727, %v1217, %v1214
        %v1224 = vld [vmem:[#allocation2] sm:$0xff]
        %v1225 = vsel %vm738, %v1218, %v1224
        %1226 = vst [vmem:[#allocation2] sm:$0xff] %v1225
        %1227 = vst.msk [vmem:[#allocation2 + $0x8] sm:$0xff] %vm744, %v1219
        %v1228 = vld [vmem:[#allocation2 + $0x10] sm:$0x11]
        %v1229 = vsel %vm750, %v1220, %v1228
        %1230 = vst [vmem:[#allocation2 + $0x10] sm:$0x11] %v1229
        %v1231 = vld [vmem:[#allocation2] sm:$0xff]
        %v1232 = vld [vmem:[#allocation2 + $0x8] sm:$0xff]
        %v1233 = vld [vmem:[%s5] sm:$0xf]
        %v1234 = vld [vmem:[%s5 + $0x4] sm:$0xf]
        %v1235 = vld [vmem:[%s5 + $0x8] sm:$0xf]
        %v1236 = vld [vmem:[%s5 + $0xc] sm:$0xf]
        %v1237 = vld [vmem:[%s5 + $0x10] sm:$0xf]
        %v1238 = vld [vmem:[%s5 + $0x14] sm:$0xf]
        %v1239 = vld [vmem:[%s5 + $0x18] sm:$0xf]
        %v1240 = vld [vmem:[%s5 + $0x1c] sm:$0xf]
        %v1241 = vld [vmem:[%s5 + $0x20] sm:$0xf]
        %v1242 = vld [vmem:[%s5 + $0x24] sm:$0xf]
        %v1243 = vld [vmem:[%s5 + $0x28] sm:$0xf]
        %v1244 = vld [vmem:[%s5 + $0x2c] sm:$0xf]
        %v1245 = vld [vmem:[%s5 + $0x30] sm:$0xf]
        %v1246 = vld [vmem:[%s5 + $0x34] sm:$0xf]
        %v1247 = vld [vmem:[%s5 + $0x38] sm:$0xf]
        %v1248 = vld [vmem:[%s5 + $0x3c] sm:$0xf]
        %v1249 = vld [vmem:[%s5 + $0x40] sm:$0xf]
        %v1250 = vld [vmem:[%s5 + $0x44] sm:$0xf]
        %v1251 = vld [vmem:[#allocation2 + $0x10] sm:$0x11]
        %s1252 = scalar_lea.vmem %s5, 72
        %v1253 = vld [vmem:[%s1252] sm:$0xf]
        %v1254 = vld [vmem:[%s1252 + $0x4] sm:$0xf]
        %v1255 = vld [vmem:[%s1252 + $0x8] sm:$0xf]
        %v1256 = vld [vmem:[%s1252 + $0xc] sm:$0xf]
        %v1257 = vld [vmem:[%s1252 + $0x10] sm:$0xf]
        %v1258 = vld [vmem:[%s1252 + $0x14] sm:$0xf]
        %v1259 = vld [vmem:[%s1252 + $0x18] sm:$0xf]
        %v1260 = vld [vmem:[%s1252 + $0x1c] sm:$0xf]
        %v1261 = vld [vmem:[%s1252 + $0x20] sm:$0xf]
        %v1262 = vld [vmem:[%s1252 + $0x24] sm:$0xf]
        %v1263 = vld [vmem:[%s1252 + $0x28] sm:$0xf]
        %v1264 = vld [vmem:[%s1252 + $0x2c] sm:$0xf]
        %v1265 = vld [vmem:[%s1252 + $0x30] sm:$0xf]
        %v1266 = vld [vmem:[%s1252 + $0x34] sm:$0xf]
        %v1267 = vld [vmem:[%s1252 + $0x38] sm:$0xf]
        %v1268 = vld [vmem:[%s1252 + $0x3c] sm:$0xf]
        %v1269 = vld [vmem:[%s1252 + $0x40] sm:$0xf]
        %v1270 = vld [vmem:[%s1252 + $0x44] sm:$0xf]
        %v1274 = vunpack.c.l.b16 %v1231
        %v1275 = vunpack.c.h.b16 %v1231
        %v1276 = vunpack.c.l.b16 %v1232
        %v1277 = vunpack.c.h.b16 %v1232
        %v1278 = vunpack.c.l.b16 %v1251
        %v1279 = vunpack.c.h.b16 %v1251
        %v1280 = vpack.c.b16 %v1276, %v1274
        %v1281 = vpack.c.b16 %v1277, %v1275
        %v1282 = vpack.c.b16 %v1278, %v1278
        %v1283 = vpack.c.b16 %v1279, %v1279
        %v1285 = vshrl.u32 %v1280, 16
        %v1287 = vshll.u32 %v1280, 16
        %v1289 = vrot.slane %v1287, 1
        %v1290 = vor.u32 %v1285, %v1289
        %v1292 = vshll.u32 %v1282, 16
        %v1294 = vrot.slane %v1292, 1
        %v1295 = vsel %vm404, %v1290, %v1294
        %v1297 = vshrl.u32 %v1281, 16
        %v1299 = vshll.u32 %v1281, 16
        %v1301 = vrot.slane %v1299, 1
        %v1302 = vor.u32 %v1297, %v1301
        %v1304 = vshll.u32 %v1283, 16
        %v1306 = vrot.slane %v1304, 1
        %v1307 = vsel %vm404, %v1302, %v1306
        %v1327 = vunpack.c.l.b16 %v1253
        %v1328 = vunpack.c.l.b16 %v1254
        %v1329 = vunpack.c.l.b16 %v1255
        %v1330 = vunpack.c.l.b16 %v1256
        %v1331 = vunpack.c.l.b16 %v1257
        %v1332 = vunpack.c.l.b16 %v1258
        %v1333 = vunpack.c.l.b16 %v1259
        %v1334 = vunpack.c.l.b16 %v1260
        %v1335 = vunpack.c.l.b16 %v1261
        %v1336 = vunpack.c.l.b16 %v1262
        %v1337 = vunpack.c.l.b16 %v1263
        %v1338 = vunpack.c.l.b16 %v1264
        %v1339 = vunpack.c.l.b16 %v1265
        %v1340 = vunpack.c.l.b16 %v1266
        %v1341 = vunpack.c.l.b16 %v1267
        %v1342 = vunpack.c.l.b16 %v1268
        %v1343 = vunpack.c.l.b16 %v1269
        %v1344 = vunpack.c.l.b16 %v1270
        %v1345 = vpack.c.b16 %v1328, %v1327
        %v1346 = vpack.c.b16 %v1330, %v1329
        %v1347 = vpack.c.b16 %v1332, %v1331
        %v1348 = vpack.c.b16 %v1334, %v1333
        %v1349 = vpack.c.b16 %v1336, %v1335
        %v1350 = vpack.c.b16 %v1338, %v1337
        %v1351 = vpack.c.b16 %v1340, %v1339
        %v1352 = vpack.c.b16 %v1342, %v1341
        %v1353 = vpack.c.b16 %v1344, %v1343
        %v1364 = vsel %vm886, %v1307, 0
        %1366 = vmatprep.subr.bf16.mxu0 0
        %1367 = vmatpush1.bf16.msra.mxu0 %v1345
        %1368 = vmatprep.subr.bf16.mxu0 0
        %1369 = vmatpush1.bf16.msra.mxu0 %v1346
        %1370 = vmatprep.subr.bf16.mxu0 0
        %1371 = vmatpush1.bf16.msra.mxu0 %v1347
        %1372 = vmatprep.subr.bf16.mxu0 0
        %1373 = vmatpush1.bf16.msra.mxu0 %v1348
        %1374 = vmatprep.subr.bf16.mxu0 0
        %1375 = vmatpush1.bf16.msra.mxu0 %v1349
        %1376 = vmatprep.subr.bf16.mxu0 0
        %1377 = vmatpush1.bf16.msra.mxu0 %v1350
        %1378 = vmatprep.subr.bf16.mxu0 0
        %1379 = vmatpush1.bf16.msra.mxu0 %v1351
        %1380 = vmatprep.subr.bf16.mxu0 0
        %1381 = vmatpush1.bf16.msra.mxu0 %v1352
        %1382 = vmatprep.subr.bf16.mxu0 0
        %1383 = vmatpush1.bf16.msra.mxu0 %v1353
        %1384 = vmatprep.subr.bf16.mxu0 0
        %1385 = vmatpush1.bf16.msra.mxu0 0
        %1386 = vmatprep.subr.bf16.mxu0 0
        %1387 = vmatpush1.bf16.msra.mxu0 0
        %1388 = vmatprep.subr.bf16.mxu0 0
        %1389 = vmatpush1.bf16.msra.mxu0 0
        %1390 = vmatprep.subr.bf16.mxu0 0
        %1391 = vmatpush1.bf16.msra.mxu0 0
        %1392 = vmatprep.subr.bf16.mxu0 0
        %1393 = vmatpush1.bf16.msra.mxu0 0
        %1394 = vmatprep.subr.bf16.mxu0 0
        %1395 = vmatpush1.bf16.msra.mxu0 0
        %1396 = vmatprep.subr.bf16.mxu0 0
        %1397 = vmatpush1.bf16.msra.mxu0 0
        %1398 = vmatprep.mubr.bf16.mxu0 %v1364
        %1399 = vmatmul.mubr.bf16.gmra.mrb[0].mxu0 %v1295
        %v1400 = vpop.f32.mrb[0].mxu0
        %v1401 = vadd.f32 0.0, %v1400
        %v1402 = vpop.f32.mrb[0].mxu0
        %v1403 = vpop.f32.mrb[0].mxu0
        %v1404 = vadd.f32 0.0, %v1403
        %v1405 = vpop.f32.mrb[0].mxu0
        %1406 = vdwg.mxu0
        %v1426 = vunpack.c.l.b16 %v1233
        %v1427 = vunpack.c.l.b16 %v1234
        %v1428 = vunpack.c.l.b16 %v1235
        %v1429 = vunpack.c.l.b16 %v1236
        %v1430 = vunpack.c.l.b16 %v1237
        %v1431 = vunpack.c.l.b16 %v1238
        %v1432 = vunpack.c.l.b16 %v1239
        %v1433 = vunpack.c.l.b16 %v1240
        %v1434 = vunpack.c.l.b16 %v1241
        %v1435 = vunpack.c.l.b16 %v1242
        %v1436 = vunpack.c.l.b16 %v1243
        %v1437 = vunpack.c.l.b16 %v1244
        %v1438 = vunpack.c.l.b16 %v1245
        %v1439 = vunpack.c.l.b16 %v1246
        %v1440 = vunpack.c.l.b16 %v1247
        %v1441 = vunpack.c.l.b16 %v1248
        %v1442 = vunpack.c.l.b16 %v1249
        %v1443 = vunpack.c.l.b16 %v1250
        %v1444 = vpack.c.b16 %v1427, %v1426
        %v1445 = vpack.c.b16 %v1429, %v1428
        %v1446 = vpack.c.b16 %v1431, %v1430
        %v1447 = vpack.c.b16 %v1433, %v1432
        %v1448 = vpack.c.b16 %v1435, %v1434
        %v1449 = vpack.c.b16 %v1437, %v1436
        %v1450 = vpack.c.b16 %v1439, %v1438
        %v1451 = vpack.c.b16 %v1441, %v1440
        %v1452 = vpack.c.b16 %v1443, %v1442
        %v1462 = vsel %vm886, %v1281, 0
        %1464 = vmatprep.subr.bf16.mxu0 0
        %1465 = vmatpush1.bf16.msra.mxu0 %v1444
        %1466 = vmatprep.subr.bf16.mxu0 0
        %1467 = vmatpush1.bf16.msra.mxu0 %v1445
        %1468 = vmatprep.subr.bf16.mxu0 0
        %1469 = vmatpush1.bf16.msra.mxu0 %v1446
        %1470 = vmatprep.subr.bf16.mxu0 0
        %1471 = vmatpush1.bf16.msra.mxu0 %v1447
        %1472 = vmatprep.subr.bf16.mxu0 0
        %1473 = vmatpush1.bf16.msra.mxu0 %v1448
        %1474 = vmatprep.subr.bf16.mxu0 0
        %1475 = vmatpush1.bf16.msra.mxu0 %v1449
        %1476 = vmatprep.subr.bf16.mxu0 0
        %1477 = vmatpush1.bf16.msra.mxu0 %v1450
        %1478 = vmatprep.subr.bf16.mxu0 0
        %1479 = vmatpush1.bf16.msra.mxu0 %v1451
        %1480 = vmatprep.subr.bf16.mxu0 0
        %1481 = vmatpush1.bf16.msra.mxu0 %v1452
        %1482 = vmatprep.subr.bf16.mxu0 0
        %1483 = vmatpush1.bf16.msra.mxu0 0
        %1484 = vmatprep.subr.bf16.mxu0 0
        %1485 = vmatpush1.bf16.msra.mxu0 0
        %1486 = vmatprep.subr.bf16.mxu0 0
        %1487 = vmatpush1.bf16.msra.mxu0 0
        %1488 = vmatprep.subr.bf16.mxu0 0
        %1489 = vmatpush1.bf16.msra.mxu0 0
        %1490 = vmatprep.subr.bf16.mxu0 0
        %1491 = vmatpush1.bf16.msra.mxu0 0
        %1492 = vmatprep.subr.bf16.mxu0 0
        %1493 = vmatpush1.bf16.msra.mxu0 0
        %1494 = vmatprep.subr.bf16.mxu0 0
        %1495 = vmatpush1.bf16.msra.mxu0 0
        %1496 = vmatprep.mubr.bf16.mxu0 %v1462
        %1497 = vmatmul.mubr.bf16.gmra.mrb[0].mxu0 %v1280
        %v1498 = vpop.f32.mrb[0].mxu0
        %v1499 = vadd.f32 %v1401, %v1498
        %v1500 = vpop.f32.mrb[0].mxu0
        %v1501 = vpop.f32.mrb[0].mxu0
        %v1502 = vadd.f32 %v1404, %v1501
        %v1503 = vpop.f32.mrb[0].mxu0
        %1504 = vdwg.mxu0
        %v1505 = vld [vmem:[#allocation2] sm:$0xee]
        %s1506 = scalar_lea.vmem %s5, 144
        %v1507 = vld [vmem:[%s1506] sm:$0xf]
        %v1508 = vld [vmem:[%s1506 + $0x4] sm:$0xf]
        %v1509 = vld [vmem:[%s1506 + $0x8] sm:$0xf]
        %v1510 = vld [vmem:[%s1506 + $0xc] sm:$0xf]
        %v1511 = vld [vmem:[%s1506 + $0x10] sm:$0xf]
        %v1512 = vld [vmem:[%s1506 + $0x14] sm:$0xf]
        %v1513 = vld [vmem:[%s1506 + $0x18] sm:$0xf]
        %v1514 = vld [vmem:[%s1506 + $0x1c] sm:$0xf]
        %v1515 = vld [vmem:[%s1506 + $0x20] sm:$0xf]
        %v1516 = vld [vmem:[%s1506 + $0x24] sm:$0xf]
        %v1517 = vld [vmem:[%s1506 + $0x28] sm:$0xf]
        %v1518 = vld [vmem:[%s1506 + $0x2c] sm:$0xf]
        %v1519 = vld [vmem:[%s1506 + $0x30] sm:$0xf]
        %v1520 = vld [vmem:[%s1506 + $0x34] sm:$0xf]
        %v1521 = vld [vmem:[%s1506 + $0x38] sm:$0xf]
        %v1522 = vld [vmem:[%s1506 + $0x3c] sm:$0xf]
        %v1523 = vld [vmem:[%s1506 + $0x40] sm:$0xf]
        %v1524 = vld [vmem:[%s1506 + $0x44] sm:$0xf]
        %v1526 = vunpack.c.l.b16 %v1505
        %v1527 = vunpack.c.h.b16 %v1505
        %v1528 = vpack.c.b16 %v1276, %v1526
        %v1529 = vpack.c.b16 %v1277, %v1527
        %v1530 = vrot.slane %v1528, 1
        %v1531 = vrot.slane %v1282, 1
        %v1532 = vsel %vm580, %v1530, %v1531
        %v1533 = vrot.slane %v1529, 1
        %v1534 = vrot.slane %v1283, 1
        %v1535 = vsel %vm580, %v1533, %v1534
        %v1555 = vunpack.c.l.b16 %v1507
        %v1556 = vunpack.c.l.b16 %v1508
        %v1557 = vunpack.c.l.b16 %v1509
        %v1558 = vunpack.c.l.b16 %v1510
        %v1559 = vunpack.c.l.b16 %v1511
        %v1560 = vunpack.c.l.b16 %v1512
        %v1561 = vunpack.c.l.b16 %v1513
        %v1562 = vunpack.c.l.b16 %v1514
        %v1563 = vunpack.c.l.b16 %v1515
        %v1564 = vunpack.c.l.b16 %v1516
        %v1565 = vunpack.c.l.b16 %v1517
        %v1566 = vunpack.c.l.b16 %v1518
        %v1567 = vunpack.c.l.b16 %v1519
        %v1568 = vunpack.c.l.b16 %v1520
        %v1569 = vunpack.c.l.b16 %v1521
        %v1570 = vunpack.c.l.b16 %v1522
        %v1571 = vunpack.c.l.b16 %v1523
        %v1572 = vunpack.c.l.b16 %v1524
        %v1573 = vpack.c.b16 %v1556, %v1555
        %v1574 = vpack.c.b16 %v1558, %v1557
        %v1575 = vpack.c.b16 %v1560, %v1559
        %v1576 = vpack.c.b16 %v1562, %v1561
        %v1577 = vpack.c.b16 %v1564, %v1563
        %v1578 = vpack.c.b16 %v1566, %v1565
        %v1579 = vpack.c.b16 %v1568, %v1567
        %v1580 = vpack.c.b16 %v1570, %v1569
        %v1581 = vpack.c.b16 %v1572, %v1571
        %v1592 = vsel %vm886, %v1535, 0
        %1594 = vmatprep.subr.bf16.mxu0 0
        %1595 = vmatpush1.bf16.msra.mxu0 %v1573
        %1596 = vmatprep.subr.bf16.mxu0 0
        %1597 = vmatpush1.bf16.msra.mxu0 %v1574
        %1598 = vmatprep.subr.bf16.mxu0 0
        %1599 = vmatpush1.bf16.msra.mxu0 %v1575
        %1600 = vmatprep.subr.bf16.mxu0 0
        %1601 = vmatpush1.bf16.msra.mxu0 %v1576
        %1602 = vmatprep.subr.bf16.mxu0 0
        %1603 = vmatpush1.bf16.msra.mxu0 %v1577
        %1604 = vmatprep.subr.bf16.mxu0 0
        %1605 = vmatpush1.bf16.msra.mxu0 %v1578
        %1606 = vmatprep.subr.bf16.mxu0 0
        %1607 = vmatpush1.bf16.msra.mxu0 %v1579
        %1608 = vmatprep.subr.bf16.mxu0 0
        %1609 = vmatpush1.bf16.msra.mxu0 %v1580
        %1610 = vmatprep.subr.bf16.mxu0 0
        %1611 = vmatpush1.bf16.msra.mxu0 %v1581
        %1612 = vmatprep.subr.bf16.mxu0 0
        %1613 = vmatpush1.bf16.msra.mxu0 0
        %1614 = vmatprep.subr.bf16.mxu0 0
        %1615 = vmatpush1.bf16.msra.mxu0 0
        %1616 = vmatprep.subr.bf16.mxu0 0
        %1617 = vmatpush1.bf16.msra.mxu0 0
        %1618 = vmatprep.subr.bf16.mxu0 0
        %1619 = vmatpush1.bf16.msra.mxu0 0
        %1620 = vmatprep.subr.bf16.mxu0 0
        %1621 = vmatpush1.bf16.msra.mxu0 0
        %1622 = vmatprep.subr.bf16.mxu0 0
        %1623 = vmatpush1.bf16.msra.mxu0 0
        %1624 = vmatprep.subr.bf16.mxu0 0
        %1625 = vmatpush1.bf16.msra.mxu0 0
        %1626 = vmatprep.mubr.bf16.mxu0 %v1592
        %1627 = vmatmul.mubr.bf16.gmra.mrb[0].mxu0 %v1532
        %v1628 = vpop.f32.mrb[0].mxu0
        %v1629 = vadd.f32 0.0, %v1628
        %v1630 = vpop.f32.mrb[0].mxu0
        %v1631 = vpop.f32.mrb[0].mxu0
        %v1632 = vadd.f32 0.0, %v1631
        %v1633 = vpop.f32.mrb[0].mxu0
        %1634 = vdwg.mxu0
        %v1635 = vadd.f32 %v1499, %v1629
        %v1636 = vadd.f32 %v1502, %v1632
        %v1637 = vld [vmem:[%s6] sm:$0x1]
        %v1639 = vlaneseq
        %v1640 = vshrl.u32 %v1639, 7
        %v1641 = vsub.s32 0, %v1640
        %v1642 = vrot.slane %v1637, %v1641
        %v1644 = vadd.f32 %v1635, %v1642
        %v1645 = vadd.f32 %v1636, %v1642
        %v1646 = vld [vmem:[%s276] sm:$0xff]
        %v1647 = vld [vmem:[%s276 + $0x8] sm:$0xff]
        %v1648 = vadd.f32 %v1646, %v1644
        %v1649 = vadd.f32 %v1647, %v1645
        %vm1650 = vcmask 523264
        %1651 = vst.msk [vmem:[%s271] sm:$0xff] %vm1650, %v1648
        %1652 = vst.msk [vmem:[%s271 + $0x8] sm:$0xff] %vm1650, %v1649
        %s1653 = sand.u32 %s181, 1
        %s1654 = scalar_lea.sflag [#allocation5], %s1653
        %s1655 = sand.u32 %s181, 1
        %s1656 = smul.addr %s1655, 16
        %s1657 = scalar_lea.vmem [#allocation4], %s1656
        // Predicated region
        $region49: #{tpu_custom_call.1} parent=47 // pred_check
          %p1658 = pneg %p191
        $region50: #{tpu_custom_call.1} parent=47 // pred_check_branch
          %1660 = sbr.rel (%p1658) target = $region52
        $region51: #{tpu_custom_call.1} parent=47 // pred_region
          %s1662 = ssub.s32 256, 256
          %1663 = vsyncadd %s1654, %s1662
          %s1664 = smul.addr %s21, 2
          %s1665 = smul.addr %s1664, 128
          %s1666 = scalar_lea.hbm %s7, %s1665
          %s1667 = sshll.u32 %s1657, 4
          %s1668 = int_to_ptr.vmem [resolvable:$true] %s1667
          %1673 = dma.vmem_to_hbm [thread:$0]  %s1668, 256, %s1666, %s1654, 128, 128, 8
        $region52: #{tpu_custom_call.1} parent=47 // pred_fallthru
          _
      $region48: #{tpu_custom_call.1} parent=5 // pred_fallthru
        _
      %p1674 = scmp.le.s32.totalorder 2, %s16
      // Predicated region
      $region53: #{tpu_custom_call.1} parent=5 // pred_check
        %p1675 = pneg %p1674
      $region54: #{tpu_custom_call.1} parent=5 // pred_check_branch
        %1677 = sbr.rel (%p1675) target = $region56
      $region55: #{tpu_custom_call.1} parent=5 // pred_region
        %s1678 = ssub.s32 %s16, 2
        // Predicated region
        $region57: #{tpu_custom_call.1} parent=55 // pred_check
          %p1679 = pneg %p197
        $region58: #{tpu_custom_call.1} parent=55 // pred_check_branch
          %1681 = sbr.rel (%p1679) target = $region60
        $region59: #{tpu_custom_call.1} parent=55 // pred_region
          %s1682 = sand.u32 %s182, 1
          %s1683 = scalar_lea.sflag [#allocation5], %s1682
          %s1684 = sand.u32 %s182, 1
          %s1685 = smul.addr %s1684, 16
          %s1686 = scalar_lea.vmem [#allocation4], %s1685
          %1687 = dma.done %s1683, 256
        $region60: #{tpu_custom_call.1} parent=55 // pred_fallthru
          _
      $region56: #{tpu_custom_call.1} parent=5 // pred_fallthru
        _
    $region6: #{tpu_custom_call.1} parent=1 // loop_footer
      %s20 = sadd.s32 1, %s16
    $region7: #{tpu_custom_call.1} parent=1 // loop_footer_branch
      %15 = sbr.rel target = $region3
    $region8: #{tpu_custom_call.1} parent=1 // loop_exit
      _
    %1688 = vsyncpa [#allocation5], 1
    %s1689 = scalar_lea.sflag [#allocation5], 1
    %1690 = vsyncpa %s1689, 1

</llo_original>
